<compile_context>
chip_gen: v7x
topology: tpu7x:2x2x1
jax: 0.10.0
libtpu: 0.0.40
codegen_flags: <defaults>
</compile_context>

<pallas_src>
import functools

import jax
import jax.numpy as jnp
from jax.experimental import pallas as pl
from jax.experimental.pallas import tpu as pltpu


# ----------------------------------------------------------------------------
# Architecture config (static Python constants -- never traced)
# ----------------------------------------------------------------------------
C0 = 8
IN_CH = 1
STAGE_WIDTHS = (C0, 2 * C0, 4 * C0, 8 * C0)
STAGE_STRIDES = (1, 2, 2, 2)
BLOCKS_PER_STAGE = 2


# ----------------------------------------------------------------------------
# Fused conv + BN(affine) + residual + ReLU Pallas kernel
# ----------------------------------------------------------------------------
def _conv_slab_kernel(*refs, stride, kh, kw, Wph, Ho, Wo, relu, has_res):
    """One image per grid step.

    ph_ref : (1, stride*stride, Hph*Wph, Cin)  flattened padded phases (bf16)
    w_ref  : (kh*kw, Cin, Cout)                gamma-folded weights   (bf16)
    b_ref  : (1, Cout)                         beta bias              (f32)
    r_ref  : (1, Ho*Wph, Cout)                 optional residual slab (bf16)
    o_ref  : (1, Ho*Wph, Cout)                 output slab            (bf16)

    out(h, w) lives at flat index h*Wph + w of the output slab; the extra
    (Wph - Wo) columns per row are written as zeros and dropped by the wrapper.
    """
    if has_res:
        ph_ref, w_ref, b_ref, r_ref, o_ref = refs
    else:
        ph_ref, w_ref, b_ref, o_ref = refs
        r_ref = None

    L = (Ho - 1) * Wph + Wo                     # flat positions covering outputs
    cout = w_ref.shape[2]

    acc = None
    for ki in range(kh):
        for kj in range(kw):
            t = ki * kw + kj
            p_idx = (ki % stride) * stride + (kj % stride)
            d = (ki // stride) * Wph + (kj // stride)
            xt = ph_ref[0, p_idx, d:d + L, :]                       # (L, Cin)
            yt = jnp.dot(xt, w_ref[t], preferred_element_type=jnp.float32)
            acc = yt if acc is None else acc + yt

    y = acc + b_ref[...]                                            # f32 epilogue
    if has_res:
        y = y + r_ref[0, 0:L, :].astype(jnp.float32)
    if relu:
        y = jnp.maximum(y, 0.0)

    o_ref[0, 0:L, :] = y.astype(o_ref.dtype)
    tail = Ho * Wph - L
    if tail > 0:
        o_ref[0, L:, :] = jnp.zeros((tail, cout), o_ref.dtype)


def conv_bn_act(x, w, gamma, beta, *, stride=1, pad=1, residual=None, relu=True,
                act_dtype=jnp.bfloat16):
    """x: (N,H,W,Cin) NHWC; w: (kh,kw,Cin,Cout). Returns (N,Ho,Wo,Cout)."""
    N, H, W, cin = x.shape
    kh, kw, _, cout = w.shape
    s = stride

    # A strided 1x1 conv is just a subsample followed by a stride-1 1x1 conv.
    if kh == 1 and kw == 1 and s > 1:
        x = x[:, ::s, ::s, :]
        N, H, W, cin = x.shape
        s = 1

    Ho = (H + 2 * pad - kh) // s + 1
    Wo = (W + 2 * pad - kw) // s + 1
    Hph = max(pl.cdiv(H + 2 * pad, s), Ho + (kh - 1) // s)
    Wph = max(pl.cdiv(W + 2 * pad, s), Wo + (kw - 1) // s)
    Hp, Wp = Hph * s, Wph * s

    xp = jnp.pad(x, ((0, 0), (pad, Hp - H - pad), (pad, Wp - W - pad), (0, 0)))

    # The stem has Cin=1; pad tiny channel counts so the contraction is healthy.
    if cin < 8:
        xp = jnp.pad(xp, ((0, 0), (0, 0), (0, 0), (0, 8 - cin)))
        w = jnp.pad(w, ((0, 0), (0, 0), (0, 8 - cin), (0, 0)))
        cin = 8

    # Phase (space-to-depth) split: stride-s conv -> stride-1 conv over phases.
    if s == 1:
        ph = xp[:, None]
    else:
        ph = jnp.stack([xp[:, a::s, b::s, :] for a in range(s) for b in range(s)],
                       axis=1)
    ph = ph.reshape(N, s * s, Hph * Wph, cin).astype(act_dtype)

    # Fold BN (eval-mode affine) into the weights / bias.
    wf = (w * gamma.reshape(1, 1, 1, cout)).reshape(kh * kw, cin, cout)
    wf = wf.astype(act_dtype)
    bias = beta.reshape(1, cout).astype(jnp.float32)

    L = (Ho - 1) * Wph + Wo
    args = [ph, wf, bias]
    in_specs = [
        pl.BlockSpec((1, s * s, Hph * Wph, cin), lambda n: (n, 0, 0, 0)),
        pl.BlockSpec((kh * kw, cin, cout), lambda n: (0, 0, 0)),
        pl.BlockSpec((1, cout), lambda n: (0, 0)),
    ]
    if residual is not None:
        r = jnp.pad(residual.astype(act_dtype),
                    ((0, 0), (0, 0), (0, Wph - Wo), (0, 0)))
        r = r.reshape(N, Ho * Wph, cout)
        args.append(r)
        in_specs.append(pl.BlockSpec((1, Ho * Wph, cout), lambda n: (n, 0, 0)))

    kernel = functools.partial(_conv_slab_kernel, stride=s, kh=kh, kw=kw,
                               Wph=Wph, Ho=Ho, Wo=Wo, relu=relu,
                               has_res=residual is not None)
    itemsize = jnp.dtype(act_dtype).itemsize
    bytes_accessed = (ph.size + wf.size + N * Ho * Wph * cout) * itemsize
    out = pl.pallas_call(
        kernel,
        grid=(N,),
        in_specs=in_specs,
        out_specs=pl.BlockSpec((1, Ho * Wph, cout), lambda n: (n, 0, 0)),
        out_shape=jax.ShapeDtypeStruct((N, Ho * Wph, cout), act_dtype),
        compiler_params=pltpu.CompilerParams(dimension_semantics=("parallel",)),
        cost_estimate=pl.CostEstimate(flops=2 * N * kh * kw * L * cin * cout,
                                      transcendentals=0,
                                      bytes_accessed=bytes_accessed),
    )(*args)
    # Drop the (Wph - Wo) scratch columns per row; both ops are free/cheap in XLA.
    return out.reshape(N, Ho, Wph, cout)[:, :, :Wo, :]


# ----------------------------------------------------------------------------
# Fused global-average-pool + projection kernel
# ----------------------------------------------------------------------------
def _gap_fc_kernel(x_ref, w_ref, b_ref, o_ref, *, inv_hw):
    xm = x_ref[0].astype(jnp.float32)                       # (H*W, C)
    feat = jnp.sum(xm, axis=0, keepdims=True) * inv_hw      # (1, C)
    y = jnp.dot(feat, w_ref[...], preferred_element_type=jnp.float32) + b_ref[...]
    o_ref[...] = y


def gap_fc(x, fc_w, fc_b):
    """x: (N,H,W,C) -> global mean pool -> (N,C) @ (C,F) + b -> (N,F) f32."""
    N, H, W, C = x.shape
    F = fc_w.shape[1]
    x2 = x.reshape(N, H * W, C)
    return pl.pallas_call(
        functools.partial(_gap_fc_kernel, inv_hw=1.0 / float(H * W)),
        grid=(N,),
        in_specs=[
            pl.BlockSpec((1, H * W, C), lambda n: (n, 0, 0)),
            pl.BlockSpec((C, F), lambda n: (0, 0)),
            pl.BlockSpec((1, F), lambda n: (0, 0)),
        ],
        out_specs=pl.BlockSpec((1, F), lambda n: (n, 0)),
        out_shape=jax.ShapeDtypeStruct((N, F), jnp.float32),
        compiler_params=pltpu.CompilerParams(dimension_semantics=("parallel",)),
    )(x2, fc_w.astype(jnp.float32), fc_b.reshape(1, F).astype(jnp.float32))


# ----------------------------------------------------------------------------
# resnet18np structural stand-in (deterministic He init, BN folded in eval mode)
# ----------------------------------------------------------------------------
def _he(key, shape, fan_in):
    return jax.random.normal(key, shape, jnp.float32) * jnp.sqrt(2.0 / fan_in)


def _init_block(key, cin, cout, downsample):
    ks = jax.random.split(key, 3)
    p = {
        "w1": _he(ks[0], (3, 3, cin, cout), 9 * cin),
        "g1": jnp.ones((cout,), jnp.float32),
        "b1": jnp.zeros((cout,), jnp.float32),
        "w2": _he(ks[1], (3, 3, cout, cout), 9 * cout),
        "g2": jnp.ones((cout,), jnp.float32),
        "b2": jnp.zeros((cout,), jnp.float32),
    }
    if downsample:
        p["wd"] = _he(ks[2], (1, 1, cin, cout), cin)
        p["gd"] = jnp.ones((cout,), jnp.float32)
        p["bd"] = jnp.zeros((cout,), jnp.float32)
    return p


def init_resnet18np_params(key, feature_cnt, in_ch=IN_CH):
    n_blocks = BLOCKS_PER_STAGE * len(STAGE_WIDTHS)
    keys = jax.random.split(key, n_blocks + 2)
    params = {
        "stem_w": _he(keys[0], (3, 3, in_ch, C0), 9 * in_ch),
        "stem_g": jnp.ones((C0,), jnp.float32),
        "stem_b": jnp.zeros((C0,), jnp.float32),
        "blocks": [],
        # NOTE: params hold arrays only -- strides/arch are static constants,
        # which fixes the previous "Slice entries must be static" tracer bug.
    }
    cin, ki = C0, 1
    for width, stride in zip(STAGE_WIDTHS, STAGE_STRIDES):
        for b in range(BLOCKS_PER_STAGE):
            c_in = cin if b == 0 else width
            s = stride if b == 0 else 1
            params["blocks"].append(
                _init_block(keys[ki], c_in, width,
                            downsample=(s != 1 or c_in != width)))
            ki += 1
        cin = width
    params["fc_w"] = _he(keys[ki], (STAGE_WIDTHS[-1], feature_cnt),
                         STAGE_WIDTHS[-1])
    params["fc_b"] = jnp.zeros((feature_cnt,), jnp.float32)
    return params


def basic_block(x, p, stride):
    identity = x
    y = conv_bn_act(x, p["w1"], p["g1"], p["b1"], stride=stride, pad=1, relu=True)
    if "wd" in p:  # projection shortcut (channel / stride change)
        identity = conv_bn_act(x, p["wd"], p["gd"], p["bd"], stride=stride,
                               pad=0, relu=False)
    # second conv + BN + residual add + ReLU, fused in one Pallas kernel
    return conv_bn_act(y, p["w2"], p["g2"], p["b2"], stride=1, pad=1,
                       residual=identity, relu=True)


def resnet18np_forward(params, x_nchw):
    x = jnp.transpose(x_nchw, (0, 2, 3, 1)).astype(jnp.float32)   # NCHW -> NHWC
    x = conv_bn_act(x, params["stem_w"], params["stem_g"], params["stem_b"],
                    stride=1, pad=1, relu=True)
    bi = 0
    for width, stride in zip(STAGE_WIDTHS, STAGE_STRIDES):
        for b in range(BLOCKS_PER_STAGE):
            x = basic_block(x, params["blocks"][bi], stride if b == 0 else 1)
            bi += 1
        del width
    feats = gap_fc(x, params["fc_w"], params["fc_b"])              # (N, F)
    # mimic the conv core's (N, feature_cnt, 1, 1) NCHW output
    return feats.reshape(feats.shape[0], feats.shape[1], 1, 1)


# ----------------------------------------------------------------------------
# Module port
# ----------------------------------------------------------------------------
class NekoStructuralVisualOnlyInterprinter:
    def __init__(self, feature_cnt, core=None, params_key=None):
        if core is None:
            if params_key is None:
                params_key = jax.random.PRNGKey(0)
            self.params = init_resnet18np_params(params_key, feature_cnt)
            self._fwd = jax.jit(resnet18np_forward)
            self.core = lambda v: self._fwd(self.params, v)
        else:
            self.core = core

    def __call__(self, view_dict):
        vp = self.core(view_dict)            # (N, feature_cnt, 1, 1)
        return vp.reshape(vp.shape[0], -1)   # vp.view(vp.shape[0], -1)


# ----------------------------------------------------------------------------
# Reference (pure XLA) ops for a light correctness check of the kernels
# ----------------------------------------------------------------------------
def _conv_reference(x, w, gamma, beta, stride, pad, residual=None, relu=True):
    y = jax.lax.conv_general_dilated(
        x.astype(jnp.float32), w.astype(jnp.float32),
        window_strides=(stride, stride),
        padding=((pad, pad), (pad, pad)),
        dimension_numbers=("NHWC", "HWIO", "NHWC"))
    y = y * gamma.reshape(1, 1, 1, -1) + beta.reshape(1, 1, 1, -1)
    if residual is not None:
        y = y + residual.astype(jnp.float32)
    if relu:
        y = jnp.maximum(y, 0.0)
    return y


if __name__ == "__main__":
    feature_cnt = 32
    key = jax.random.PRNGKey(0)
    kx, kp, kt = jax.random.split(key, 3)

    # ---- spot-check the fused conv kernel (stride-2 + residual + ReLU path) ----
    kc = jax.random.split(kt, 8)
    xc = jax.random.normal(kc[0], (2, 16, 16, 16), jnp.float32)
    wc = _he(kc[1], (3, 3, 16, 32), 9 * 16)
    gc = 1.0 + 0.1 * jax.random.normal(kc[2], (32,), jnp.float32)
    bc = 0.1 * jax.random.normal(kc[3], (32,), jnp.float32)
    rc = jax.random.normal(kc[4], (2, 8, 8, 32), jnp.float32)
    got = conv_bn_act(xc, wc, gc, bc, stride=2, pad=1, residual=rc, relu=True)
    want = _conv_reference(xc, wc, gc, bc, 2, 1, residual=rc, relu=True)
    err = float(jnp.max(jnp.abs(got.astype(jnp.float32) - want)))
    assert err < 0.2, f"conv kernel mismatch: max abs err {err}"

    # ---- spot-check the fused pool + projection kernel ----
    xg = jnp.maximum(jax.random.normal(kc[5], (2, 4, 4, 64), jnp.float32), 0.0)
    fcw = _he(kc[6], (64, feature_cnt), 64)
    fcb = 0.1 * jax.random.normal(kc[7], (feature_cnt,), jnp.float32)
    gotf = gap_fc(xg, fcw, fcb)
    wantf = jnp.mean(xg, axis=(1, 2)) @ fcw + fcb
    errf = float(jnp.max(jnp.abs(gotf - wantf)))
    assert errf < 0.1, f"gap_fc kernel mismatch: max abs err {errf}"

    # ---- full module forward: glyph-style input, NCHW like PyTorch ----
    x = jax.random.normal(kx, (2, 1, 32, 32), jnp.float32)
    model = NekoStructuralVisualOnlyInterprinter(feature_cnt, params_key=kp)
    out = jax.block_until_ready(model(x))
    assert out.shape == (2, feature_cnt), out.shape
    assert bool(jnp.all(jnp.isfinite(out)))
    print("KERNEL_OK")
</pallas_src>

<mosaic_0001>
module attributes {stable_mosaic.version = 11 : i64} {
  func.func @_conv_slab_kernel(%arg0: i32, %arg1: memref<1x4x81x16xbf16, #tpu.memory_space<vmem>>, %arg2: memref<9x16x32xbf16, #tpu.memory_space<vmem>>, %arg3: memref<1x32xf32, #tpu.memory_space<vmem>>, %arg4: memref<1x72x32xbf16, #tpu.memory_space<vmem>>, %arg5: memref<1x72x32xbf16, #tpu.memory_space<vmem>>) attributes {dimension_semantics = [#tpu.dimension_semantics<parallel>], iteration_bounds = array<i64: 2>, scalar_prefetch = 0 : i64, scratch_operands = 0 : i64, tpu.core_type = #tpu.core_type<tc>, window_params = [{transform_indices = @transform_0, window_bounds = array<i64: 1, 4, 81, 16>}, {pipeline_mode = #tpu.pipeline_mode<synchronous>, transform_indices = @transform_1, window_bounds = array<i64: 9, 16, 32>}, {pipeline_mode = #tpu.pipeline_mode<synchronous>, transform_indices = @transform_2, window_bounds = array<i64: 1, 32>}, {transform_indices = @transform_3, window_bounds = array<i64: 1, 72, 32>}, {transform_indices = @transform_4, window_bounds = array<i64: 1, 72, 32>}]} {
    %c0 = arith.constant 0 : index
    %c0_0 = arith.constant 0 : index
    %c0_1 = arith.constant 0 : index
    %c0_2 = arith.constant 0 : index
    %0 = vector.load %arg1[%c0, %c0_0, %c0_1, %c0_2] : memref<1x4x81x16xbf16, #tpu.memory_space<vmem>>, vector<1x1x71x16xbf16>
    %1 = vector.shape_cast %0 : vector<1x1x71x16xbf16> to vector<71x16xbf16>
    %c0_3 = arith.constant 0 : index
    %c0_4 = arith.constant 0 : index
    %c0_5 = arith.constant 0 : index
    %2 = vector.load %arg2[%c0_3, %c0_4, %c0_5] : memref<9x16x32xbf16, #tpu.memory_space<vmem>>, vector<1x16x32xbf16>
    %3 = vector.shape_cast %2 : vector<1x16x32xbf16> to vector<16x32xbf16>
    %cst = arith.constant dense<0.000000e+00> : vector<71x32xf32>
    %4 = tpu.matmul %1, %3, %cst {dimension_numbers = #tpu.dot_dimension_numbers<[1], [0], [0], [1], [0, 0, 1, 1], [], []>} : vector<71x16xbf16>, vector<16x32xbf16>, vector<71x32xf32> -> vector<71x32xf32>
    %c0_6 = arith.constant 0 : index
    %c1 = arith.constant 1 : index
    %c0_7 = arith.constant 0 : index
    %c0_8 = arith.constant 0 : index
    %5 = vector.load %arg1[%c0_6, %c1, %c0_7, %c0_8] : memref<1x4x81x16xbf16, #tpu.memory_space<vmem>>, vector<1x1x71x16xbf16>
    %6 = vector.shape_cast %5 : vector<1x1x71x16xbf16> to vector<71x16xbf16>
    %c1_9 = arith.constant 1 : index
    %c0_10 = arith.constant 0 : index
    %c0_11 = arith.constant 0 : index
    %7 = vector.load %arg2[%c1_9, %c0_10, %c0_11] : memref<9x16x32xbf16, #tpu.memory_space<vmem>>, vector<1x16x32xbf16>
    %8 = vector.shape_cast %7 : vector<1x16x32xbf16> to vector<16x32xbf16>
    %cst_12 = arith.constant dense<0.000000e+00> : vector<71x32xf32>
    %9 = tpu.matmul %6, %8, %cst_12 {dimension_numbers = #tpu.dot_dimension_numbers<[1], [0], [0], [1], [0, 0, 1, 1], [], []>} : vector<71x16xbf16>, vector<16x32xbf16>, vector<71x32xf32> -> vector<71x32xf32>
    %10 = arith.addf %4, %9 : vector<71x32xf32>
    %c0_13 = arith.constant 0 : index
    %c0_14 = arith.constant 0 : index
    %c1_15 = arith.constant 1 : index
    %c0_16 = arith.constant 0 : index
    %11 = vector.load %arg1[%c0_13, %c0_14, %c1_15, %c0_16] : memref<1x4x81x16xbf16, #tpu.memory_space<vmem>>, vector<1x1x71x16xbf16>
    %12 = vector.shape_cast %11 : vector<1x1x71x16xbf16> to vector<71x16xbf16>
    %c2 = arith.constant 2 : index
    %c0_17 = arith.constant 0 : index
    %c0_18 = arith.constant 0 : index
    %13 = vector.load %arg2[%c2, %c0_17, %c0_18] : memref<9x16x32xbf16, #tpu.memory_space<vmem>>, vector<1x16x32xbf16>
    %14 = vector.shape_cast %13 : vector<1x16x32xbf16> to vector<16x32xbf16>
    %cst_19 = arith.constant dense<0.000000e+00> : vector<71x32xf32>
    %15 = tpu.matmul %12, %14, %cst_19 {dimension_numbers = #tpu.dot_dimension_numbers<[1], [0], [0], [1], [0, 0, 1, 1], [], []>} : vector<71x16xbf16>, vector<16x32xbf16>, vector<71x32xf32> -> vector<71x32xf32>
    %16 = arith.addf %10, %15 : vector<71x32xf32>
    %c0_20 = arith.constant 0 : index
    %c2_21 = arith.constant 2 : index
    %c0_22 = arith.constant 0 : index
    %c0_23 = arith.constant 0 : index
    %17 = vector.load %arg1[%c0_20, %c2_21, %c0_22, %c0_23] : memref<1x4x81x16xbf16, #tpu.memory_space<vmem>>, vector<1x1x71x16xbf16>
    %18 = vector.shape_cast %17 : vector<1x1x71x16xbf16> to vector<71x16xbf16>
    %c3 = arith.constant 3 : index
    %c0_24 = arith.constant 0 : index
    %c0_25 = arith.constant 0 : index
    %19 = vector.load %arg2[%c3, %c0_24, %c0_25] : memref<9x16x32xbf16, #tpu.memory_space<vmem>>, vector<1x16x32xbf16>
    %20 = vector.shape_cast %19 : vector<1x16x32xbf16> to vector<16x32xbf16>
    %cst_26 = arith.constant dense<0.000000e+00> : vector<71x32xf32>
    %21 = tpu.matmul %18, %20, %cst_26 {dimension_numbers = #tpu.dot_dimension_numbers<[1], [0], [0], [1], [0, 0, 1, 1], [], []>} : vector<71x16xbf16>, vector<16x32xbf16>, vector<71x32xf32> -> vector<71x32xf32>
    %22 = arith.addf %16, %21 : vector<71x32xf32>
    %c0_27 = arith.constant 0 : index
    %c3_28 = arith.constant 3 : index
    %c0_29 = arith.constant 0 : index
    %c0_30 = arith.constant 0 : index
    %23 = vector.load %arg1[%c0_27, %c3_28, %c0_29, %c0_30] : memref<1x4x81x16xbf16, #tpu.memory_space<vmem>>, vector<1x1x71x16xbf16>
    %24 = vector.shape_cast %23 : vector<1x1x71x16xbf16> to vector<71x16xbf16>
    %c4 = arith.constant 4 : index
    %c0_31 = arith.constant 0 : index
    %c0_32 = arith.constant 0 : index
    %25 = vector.load %arg2[%c4, %c0_31, %c0_32] : memref<9x16x32xbf16, #tpu.memory_space<vmem>>, vector<1x16x32xbf16>
    %26 = vector.shape_cast %25 : vector<1x16x32xbf16> to vector<16x32xbf16>
    %cst_33 = arith.constant dense<0.000000e+00> : vector<71x32xf32>
    %27 = tpu.matmul %24, %26, %cst_33 {dimension_numbers = #tpu.dot_dimension_numbers<[1], [0], [0], [1], [0, 0, 1, 1], [], []>} : vector<71x16xbf16>, vector<16x32xbf16>, vector<71x32xf32> -> vector<71x32xf32>
    %28 = arith.addf %22, %27 : vector<71x32xf32>
    %c0_34 = arith.constant 0 : index
    %c2_35 = arith.constant 2 : index
    %c1_36 = arith.constant 1 : index
    %c0_37 = arith.constant 0 : index
    %29 = vector.load %arg1[%c0_34, %c2_35, %c1_36, %c0_37] : memref<1x4x81x16xbf16, #tpu.memory_space<vmem>>, vector<1x1x71x16xbf16>
    %30 = vector.shape_cast %29 : vector<1x1x71x16xbf16> to vector<71x16xbf16>
    %c5 = arith.constant 5 : index
    %c0_38 = arith.constant 0 : index
    %c0_39 = arith.constant 0 : index
    %31 = vector.load %arg2[%c5, %c0_38, %c0_39] : memref<9x16x32xbf16, #tpu.memory_space<vmem>>, vector<1x16x32xbf16>
    %32 = vector.shape_cast %31 : vector<1x16x32xbf16> to vector<16x32xbf16>
    %cst_40 = arith.constant dense<0.000000e+00> : vector<71x32xf32>
    %33 = tpu.matmul %30, %32, %cst_40 {dimension_numbers = #tpu.dot_dimension_numbers<[1], [0], [0], [1], [0, 0, 1, 1], [], []>} : vector<71x16xbf16>, vector<16x32xbf16>, vector<71x32xf32> -> vector<71x32xf32>
    %34 = arith.addf %28, %33 : vector<71x32xf32>
    %c0_41 = arith.constant 0 : index
    %c0_42 = arith.constant 0 : index
    %c9 = arith.constant 9 : index
    %c0_43 = arith.constant 0 : index
    %35 = vector.load %arg1[%c0_41, %c0_42, %c9, %c0_43] : memref<1x4x81x16xbf16, #tpu.memory_space<vmem>>, vector<1x1x71x16xbf16>
    %36 = vector.shape_cast %35 : vector<1x1x71x16xbf16> to vector<71x16xbf16>
    %c6 = arith.constant 6 : index
    %c0_44 = arith.constant 0 : index
    %c0_45 = arith.constant 0 : index
    %37 = vector.load %arg2[%c6, %c0_44, %c0_45] : memref<9x16x32xbf16, #tpu.memory_space<vmem>>, vector<1x16x32xbf16>
    %38 = vector.shape_cast %37 : vector<1x16x32xbf16> to vector<16x32xbf16>
    %cst_46 = arith.constant dense<0.000000e+00> : vector<71x32xf32>
    %39 = tpu.matmul %36, %38, %cst_46 {dimension_numbers = #tpu.dot_dimension_numbers<[1], [0], [0], [1], [0, 0, 1, 1], [], []>} : vector<71x16xbf16>, vector<16x32xbf16>, vector<71x32xf32> -> vector<71x32xf32>
    %40 = arith.addf %34, %39 : vector<71x32xf32>
    %c0_47 = arith.constant 0 : index
    %c1_48 = arith.constant 1 : index
    %c9_49 = arith.constant 9 : index
    %c0_50 = arith.constant 0 : index
    %41 = vector.load %arg1[%c0_47, %c1_48, %c9_49, %c0_50] : memref<1x4x81x16xbf16, #tpu.memory_space<vmem>>, vector<1x1x71x16xbf16>
    %42 = vector.shape_cast %41 : vector<1x1x71x16xbf16> to vector<71x16xbf16>
    %c7 = arith.constant 7 : index
    %c0_51 = arith.constant 0 : index
    %c0_52 = arith.constant 0 : index
    %43 = vector.load %arg2[%c7, %c0_51, %c0_52] : memref<9x16x32xbf16, #tpu.memory_space<vmem>>, vector<1x16x32xbf16>
    %44 = vector.shape_cast %43 : vector<1x16x32xbf16> to vector<16x32xbf16>
    %cst_53 = arith.constant dense<0.000000e+00> : vector<71x32xf32>
    %45 = tpu.matmul %42, %44, %cst_53 {dimension_numbers = #tpu.dot_dimension_numbers<[1], [0], [0], [1], [0, 0, 1, 1], [], []>} : vector<71x16xbf16>, vector<16x32xbf16>, vector<71x32xf32> -> vector<71x32xf32>
    %46 = arith.addf %40, %45 : vector<71x32xf32>
    %c0_54 = arith.constant 0 : index
    %c0_55 = arith.constant 0 : index
    %c10 = arith.constant 10 : index
    %c0_56 = arith.constant 0 : index
    %47 = vector.load %arg1[%c0_54, %c0_55, %c10, %c0_56] : memref<1x4x81x16xbf16, #tpu.memory_space<vmem>>, vector<1x1x71x16xbf16>
    %48 = vector.shape_cast %47 : vector<1x1x71x16xbf16> to vector<71x16xbf16>
    %c8 = arith.constant 8 : index
    %c0_57 = arith.constant 0 : index
    %c0_58 = arith.constant 0 : index
    %49 = vector.load %arg2[%c8, %c0_57, %c0_58] : memref<9x16x32xbf16, #tpu.memory_space<vmem>>, vector<1x16x32xbf16>
    %50 = vector.shape_cast %49 : vector<1x16x32xbf16> to vector<16x32xbf16>
    %cst_59 = arith.constant dense<0.000000e+00> : vector<71x32xf32>
    %51 = tpu.matmul %48, %50, %cst_59 {dimension_numbers = #tpu.dot_dimension_numbers<[1], [0], [0], [1], [0, 0, 1, 1], [], []>} : vector<71x16xbf16>, vector<16x32xbf16>, vector<71x32xf32> -> vector<71x32xf32>
    %52 = arith.addf %46, %51 : vector<71x32xf32>
    %c0_60 = arith.constant 0 : index
    %c0_61 = arith.constant 0 : index
    %53 = vector.load %arg3[%c0_60, %c0_61] : memref<1x32xf32, #tpu.memory_space<vmem>>, vector<1x32xf32>
    %54 = vector.broadcast %53 : vector<1x32xf32> to vector<71x32xf32>
    %55 = arith.addf %52, %54 : vector<71x32xf32>
    %c0_62 = arith.constant 0 : index
    %c0_63 = arith.constant 0 : index
    %c0_64 = arith.constant 0 : index
    %56 = vector.load %arg4[%c0_62, %c0_63, %c0_64] : memref<1x72x32xbf16, #tpu.memory_space<vmem>>, vector<1x71x32xbf16>
    %57 = vector.shape_cast %56 : vector<1x71x32xbf16> to vector<71x32xbf16>
    %58 = arith.extf %57 : vector<71x32xbf16> to vector<71x32xf32>
    %59 = arith.addf %55, %58 : vector<71x32xf32>
    %cst_65 = arith.constant 0.000000e+00 : f32
    %60 = vector.broadcast %cst_65 : f32 to vector<71x32xf32>
    %61 = arith.maximumf %59, %60 : vector<71x32xf32>
    %62 = arith.truncf %61 : vector<71x32xf32> to vector<71x32xbf16>
    %c0_66 = arith.constant 0 : index
    %c0_67 = arith.constant 0 : index
    %c0_68 = arith.constant 0 : index
    %63 = vector.load %arg5[%c0_66, %c0_67, %c0_68] : memref<1x72x32xbf16, #tpu.memory_space<vmem>>, vector<1x71x32xbf16>
    %64 = vector.shape_cast %63 : vector<1x71x32xbf16> to vector<71x32xbf16>
    %65 = vector.shape_cast %62 : vector<71x32xbf16> to vector<1x71x32xbf16>
    tpu.vector_store %arg5[%c0_66, %c0_67, %c0_68], %65 {strides = array<i32>} : memref<1x72x32xbf16, #tpu.memory_space<vmem>>, vector<1x71x32xbf16>,
    %cst_69 = arith.constant 0.000000e+00 : bf16
    %66 = vector.broadcast %cst_69 : bf16 to vector<1x32xbf16>
    %c0_70 = arith.constant 0 : index
    %c71 = arith.constant 71 : index
    %c0_71 = arith.constant 0 : index
    %67 = vector.load %arg5[%c0_70, %c71, %c0_71] : memref<1x72x32xbf16, #tpu.memory_space<vmem>>, vector<1x1x32xbf16>
    %68 = vector.shape_cast %67 : vector<1x1x32xbf16> to vector<1x32xbf16>
    %69 = vector.shape_cast %66 : vector<1x32xbf16> to vector<1x1x32xbf16>
    tpu.vector_store %arg5[%c0_70, %c71, %c0_71], %69 {strides = array<i32>} : memref<1x72x32xbf16, #tpu.memory_space<vmem>>, vector<1x1x32xbf16>,
    return
  }
  func.func @transform_0(%arg0: i32) -> (i32, i32, i32, i32) {
    %c0_i32 = arith.constant 0 : i32
    %c0_i32_0 = arith.constant 0 : i32
    %c0_i32_1 = arith.constant 0 : i32
    %c0_i32_2 = arith.constant 0 : i32
    return %arg0, %c0_i32, %c0_i32_0, %c0_i32_1 : i32, i32, i32, i32
  }
  func.func @transform_1(%arg0: i32) -> (i32, i32, i32) {
    %c0_i32 = arith.constant 0 : i32
    %c0_i32_0 = arith.constant 0 : i32
    %c0_i32_1 = arith.constant 0 : i32
    %c0_i32_2 = arith.constant 0 : i32
    return %c0_i32, %c0_i32_0, %c0_i32_1 : i32, i32, i32
  }
  func.func @transform_2(%arg0: i32) -> (i32, i32) {
    %c0_i32 = arith.constant 0 : i32
    %c0_i32_0 = arith.constant 0 : i32
    %c0_i32_1 = arith.constant 0 : i32
    return %c0_i32, %c0_i32_0 : i32, i32
  }
  func.func @transform_3(%arg0: i32) -> (i32, i32, i32) {
    %c0_i32 = arith.constant 0 : i32
    %c0_i32_0 = arith.constant 0 : i32
    %c0_i32_1 = arith.constant 0 : i32
    return %arg0, %c0_i32, %c0_i32_0 : i32, i32, i32
  }
  func.func @transform_4(%arg0: i32) -> (i32, i32, i32) {
    %c0_i32 = arith.constant 0 : i32
    %c0_i32_0 = arith.constant 0 : i32
    %c0_i32_1 = arith.constant 0 : i32
    return %arg0, %c0_i32, %c0_i32_0 : i32, i32, i32
  }
}

</mosaic_0001>

<llo_original>
// kernel: tpu_custom_call.1
$region0: #{tpu_custom_call.1}
  #allocation0 [shape = 'u32[]', space=smem, size = 0x4, offset = 0x4, fixed_abs, tag = 'smem constant byte address 0x4 - core index']
  #allocation1 [shape = 'u32[144,128]{1,0:T(1,128)}', space=vmem, size = 0x12000, scoped, tag = 'internal scratch']
  %s0 = inlined_call_operand.vmem [shape: bf16[2,4,81,16], index: 0, kind: input, shape index: {}]
  %s1 = inlined_call_operand.vmem [shape: bf16[9,16,32], index: 1, kind: input, shape index: {}]
  %s2 = inlined_call_operand.vmem [shape: f32[1,32], index: 2, kind: input, shape index: {}]
  %s3 = inlined_call_operand.vmem [shape: bf16[2,72,32], index: 3, kind: input, shape index: {}]
  %s4 = inlined_call_operand.vmem [shape: bf16[2,72,32], index: 4, kind: output, shape index: {}]
  %s5 = sld [smem:[#allocation0]]
  $region49: #{tpu_custom_call.1} parent=0
    _
  %s7 = ssub.s32 1, %s5
  %s8 = scalar_select 0, %s7, %s5
  loop: start=0, step=1, limit=4
  $region2: #{tpu_custom_call.1} parent=0 // loop_pre_header
    _
  $region3: #{tpu_custom_call.1} parent=0 // loop_header
    %s10 = sphi 0, %s14
    %p11 = scmp.ge.s32.totalorder %s10, 4
    %s20 = sphi 0, %s22
    %s23 = sphi 0, %s20
    %s24 = sphi 0, %s23
    %s40 = sphi 0, %s24
    %s44 = sphi 0, %s44
    %s46 = sphi 0, %s44
    %s47 = sphi 0, %s46
    %s61 = sphi 0, %s47
    %s65 = sphi 0, %s65
    %s67 = sphi 0, %s65
    %s68 = sphi 0, %s67
    %s82 = sphi 0, %s68
    %s88 = sphi 0, %s90
    %s91 = sphi 0, %s88
    %s92 = sphi 0, %s91
    %s108 = sphi 0, %s92
    %s114 = sphi 0, %s116
    %s117 = sphi 0, %s114
    %s118 = sphi 0, %s117
    %s134 = sphi 0, %s118
  $region4: #{tpu_custom_call.1} parent=0 // loop_header_branch
    %13 = sbr.rel (%p11) target = $region8
  $region5: #{tpu_custom_call.1} parent=0 // loop_body
    %s15 = ssub.s32 %s10, 1
    %s16 = ssub.s32 %s10, 2
    %s17 = sadd.s32 %s10, 1
    %s18 = ssub.s32 %s10, %s17
    %p19 = scmp.eq.s32.totalorder %s18, 0
    %s21 = sadd.s32 %s20, 1
    %s22 = scalar_select %p19, %s20, %s21
    %p25 = pneg %p19
    %p26 = scmp.eq.s32.totalorder %s10, 1
    %p27 = por %p25, %p26
    %p28 = scmp.ne.s32.totalorder %s20, %s23
    %p29 = scmp.eq.s32.totalorder %s10, 0
    %p30 = por %p28, %p29
    %p31 = scmp.ne.s32.totalorder %s20, %s23
    %p32 = scmp.eq.s32.totalorder %s15, 1
    %p33 = por %p31, %p32
    %p34 = scmp.ne.s32.totalorder %s23, %s24
    %p35 = scmp.eq.s32.totalorder %s15, 0
    %p36 = por %p34, %p35
    %p37 = scmp.ne.s32.totalorder %s23, %s24
    %p38 = scmp.eq.s32.totalorder %s16, 1
    %p39 = por %p37, %p38
    %p41 = scmp.ne.s32.totalorder %s24, %s40
    %p42 = scmp.eq.s32.totalorder %s16, 0
    %p43 = por %p41, %p42
    %s45 = sadd.s32 %s44, 1
    %p48 = scmp.eq.s32.totalorder %s10, 1
    %p49 = scmp.ne.s32.totalorder %s44, %s46
    %p50 = scmp.eq.s32.totalorder %s10, 0
    %p51 = por %p49, %p50
    %p52 = scmp.ne.s32.totalorder %s44, %s46
    %p53 = scmp.eq.s32.totalorder %s15, 1
    %p54 = por %p52, %p53
    %p55 = scmp.ne.s32.totalorder %s46, %s47
    %p56 = scmp.eq.s32.totalorder %s15, 0
    %p57 = por %p55, %p56
    %p58 = scmp.ne.s32.totalorder %s46, %s47
    %p59 = scmp.eq.s32.totalorder %s16, 1
    %p60 = por %p58, %p59
    %p62 = scmp.ne.s32.totalorder %s47, %s61
    %p63 = scmp.eq.s32.totalorder %s16, 0
    %p64 = por %p62, %p63
    %s66 = sadd.s32 %s65, 1
    %p69 = scmp.eq.s32.totalorder %s10, 1
    %p70 = scmp.ne.s32.totalorder %s65, %s67
    %p71 = scmp.eq.s32.totalorder %s10, 0
    %p72 = por %p70, %p71
    %p73 = scmp.ne.s32.totalorder %s65, %s67
    %p74 = scmp.eq.s32.totalorder %s15, 1
    %p75 = por %p73, %p74
    %p76 = scmp.ne.s32.totalorder %s67, %s68
    %p77 = scmp.eq.s32.totalorder %s15, 0
    %p78 = por %p76, %p77
    %p79 = scmp.ne.s32.totalorder %s67, %s68
    %p80 = scmp.eq.s32.totalorder %s16, 1
    %p81 = por %p79, %p80
    %p83 = scmp.ne.s32.totalorder %s68, %s82
    %p84 = scmp.eq.s32.totalorder %s16, 0
    %p85 = por %p83, %p84
    %s86 = ssub.s32 %s10, %s17
    %p87 = scmp.eq.s32.totalorder %s86, 0
    %s89 = sadd.s32 %s88, 1
    %s90 = scalar_select %p87, %s88, %s89
    %p93 = pneg %p87
    %p94 = scmp.eq.s32.totalorder %s10, 1
    %p95 = por %p93, %p94
    %p96 = scmp.ne.s32.totalorder %s88, %s91
    %p97 = scmp.eq.s32.totalorder %s10, 0
    %p98 = por %p96, %p97
    %p99 = scmp.ne.s32.totalorder %s88, %s91
    %p100 = scmp.eq.s32.totalorder %s15, 1
    %p101 = por %p99, %p100
    %p102 = scmp.ne.s32.totalorder %s91, %s92
    %p103 = scmp.eq.s32.totalorder %s15, 0
    %p104 = por %p102, %p103
    %p105 = scmp.ne.s32.totalorder %s91, %s92
    %p106 = scmp.eq.s32.totalorder %s16, 1
    %p107 = por %p105, %p106
    %p109 = scmp.ne.s32.totalorder %s92, %s108
    %p110 = scmp.eq.s32.totalorder %s16, 0
    %p111 = por %p109, %p110
    %s112 = ssub.s32 %s10, %s17
    %p113 = scmp.eq.s32.totalorder %s112, 0
    %s115 = sadd.s32 %s114, 1
    %s116 = scalar_select %p113, %s114, %s115
    %p119 = pneg %p113
    %p120 = scmp.eq.s32.totalorder %s10, 1
    %p121 = por %p119, %p120
    %p122 = scmp.ne.s32.totalorder %s114, %s117
    %p123 = scmp.eq.s32.totalorder %s10, 0
    %p124 = por %p122, %p123
    %p125 = scmp.ne.s32.totalorder %s114, %s117
    %p126 = scmp.eq.s32.totalorder %s15, 1
    %p127 = por %p125, %p126
    %p128 = scmp.ne.s32.totalorder %s117, %s118
    %p129 = scmp.eq.s32.totalorder %s15, 0
    %p130 = por %p128, %p129
    %p131 = scmp.ne.s32.totalorder %s117, %s118
    %p132 = scmp.eq.s32.totalorder %s16, 1
    %p133 = por %p131, %p132
    %p135 = scmp.ne.s32.totalorder %s118, %s134
    %p136 = scmp.eq.s32.totalorder %s16, 0
    %p137 = por %p135, %p136
    %p138 = scmp.le.s32.totalorder 1, %s10
    %p139 = scmp.lt.s32.totalorder %s10, 3
    %p140 = pnand %p138, %p139
    %p141 = pneg %p140
    // Predicated region
    $region9: #{tpu_custom_call.1} parent=5 // pred_check
      _
    $region10: #{tpu_custom_call.1} parent=5 // pred_check_branch
      %143 = sbr.rel (%p140) target = $region12
    $region11: #{tpu_custom_call.1} parent=5 // pred_region
      %s144 = ssub.s32 %s10, 1
      // Predicated region
      $region13: #{tpu_custom_call.1} parent=11 // pred_check
        %p145 = pneg %p57
      $region14: #{tpu_custom_call.1} parent=11 // pred_check_branch
        %147 = sbr.rel (%p145) target = $region16
      $region15: #{tpu_custom_call.1} parent=11 // pred_region
        _
      $region16: #{tpu_custom_call.1} parent=11 // pred_fallthru
        _
      // Predicated region
      $region17: #{tpu_custom_call.1} parent=11 // pred_check
        %p148 = pneg %p78
      $region18: #{tpu_custom_call.1} parent=11 // pred_check_branch
        %150 = sbr.rel (%p148) target = $region20
      $region19: #{tpu_custom_call.1} parent=11 // pred_region
        _
      $region20: #{tpu_custom_call.1} parent=11 // pred_fallthru
        _
    $region12: #{tpu_custom_call.1} parent=5 // pred_fallthru
      _
    %p151 = scmp.lt.s32.totalorder %s10, 2
    // Predicated region
    $region21: #{tpu_custom_call.1} parent=5 // pred_check
      %p152 = pneg %p151
    $region22: #{tpu_custom_call.1} parent=5 // pred_check_branch
      %154 = sbr.rel (%p152) target = $region24
    $region23: #{tpu_custom_call.1} parent=5 // pred_region
      // Predicated region
      $region25: #{tpu_custom_call.1} parent=23 // pred_check
        %p155 = pneg %p30
      $region26: #{tpu_custom_call.1} parent=23 // pred_check_branch
        %157 = sbr.rel (%p155) target = $region28
      $region27: #{tpu_custom_call.1} parent=23 // pred_region
        %p158 = scmp.lt.s32.totalorder %s10, 1
        %s159 = scalar_select %p158, %s10, 1
        %s160 = smul.addr %s159, 44
        %s161 = smul.addr %s160, 4
        %s162 = scalar_lea.vmem %s0, %s161
      $region28: #{tpu_custom_call.1} parent=23 // pred_fallthru
        _
      // Predicated region
      $region29: #{tpu_custom_call.1} parent=23 // pred_check
        %p163 = pneg %p98
      $region30: #{tpu_custom_call.1} parent=23 // pred_check_branch
        %165 = sbr.rel (%p163) target = $region32
      $region31: #{tpu_custom_call.1} parent=23 // pred_region
        %p166 = scmp.lt.s32.totalorder %s10, 1
        %s167 = scalar_select %p166, %s10, 1
        %s168 = smul.addr %s167, 9
        %s169 = smul.addr %s168, 4
        %s170 = scalar_lea.vmem %s3, %s169
      $region32: #{tpu_custom_call.1} parent=23 // pred_fallthru
        _
    $region24: #{tpu_custom_call.1} parent=5 // pred_fallthru
      _
    %p171 = scmp.le.s32.totalorder 1, %s10
    %p172 = scmp.lt.s32.totalorder %s10, 3
    %p173 = pnand %p171, %p172
    %p174 = pneg %p173
    // Predicated region
    $region33: #{tpu_custom_call.1} parent=5 // pred_check
      _
    $region34: #{tpu_custom_call.1} parent=5 // pred_check_branch
      %176 = sbr.rel (%p173) target = $region36
    $region35: #{tpu_custom_call.1} parent=5 // pred_region
      %s177 = ssub.s32 %s10, 1
      %p178 = scmp.lt.s32.totalorder %s15, 1
      %s179 = scalar_select %p178, %s15, 1
      %s180 = smul.addr %s179, 44
      %s181 = smul.addr %s180, 4
      %s182 = scalar_lea.vmem %s0, %s181
      %p183 = pneg %p36
      %p184 = pneg %p33
      %p185 = pneg %p57
      %p186 = pneg %p54
      %p187 = pneg %p78
      %p188 = pneg %p75
      %p189 = scmp.lt.s32.totalorder %s15, 1
      %s190 = scalar_select %p189, %s15, 1
      %s191 = smul.addr %s190, 9
      %s192 = smul.addr %s191, 4
      %s193 = scalar_lea.vmem %s3, %s192
      %p194 = pneg %p104
      %p195 = pneg %p101
      %p196 = pneg %p130
      %p197 = pneg %p127
      %p198 = scmp.lt.s32.totalorder %s15, 1
      %s199 = scalar_select %p198, %s15, 1
      %s200 = smul.addr %s199, 9
      %s201 = smul.addr %s200, 4
      %s202 = scalar_lea.vmem %s4, %s201
      %p203 = scmp.lt.s32.totalorder %s15, 1
      %s204 = scalar_select %p203, %s15, 1
      %s205 = smul.addr %s204, 44
      %s206 = smul.addr %s205, 4
      %s207 = scalar_lea.vmem %s0, %s206
      %p208 = scmp.lt.s32.totalorder %s15, 1
      %s209 = scalar_select %p208, %s15, 1
      %s210 = smul.addr %s209, 9
      %s211 = smul.addr %s210, 4
      %s212 = scalar_lea.vmem %s3, %s211
      %p213 = scmp.lt.s32.totalorder %s15, 1
      %s214 = scalar_select %p213, %s15, 1
      %s215 = smul.addr %s214, 9
      %s216 = smul.addr %s215, 4
      %s217 = scalar_lea.vmem %s4, %s216
      %v219 = vld [vmem:[%s207] sm:$0xf]
      %v220 = vld [vmem:[%s207 + $0x4] sm:$0xf]
      %v221 = vld [vmem:[%s207 + $0x8] sm:$0xf]
      %v222 = vld [vmem:[%s207 + $0xc] sm:$0xf]
      %v223 = vld [vmem:[%s207 + $0x10] sm:$0xf]
      %v224 = vld [vmem:[%s207 + $0x14] sm:$0xf]
      %v225 = vld [vmem:[%s207 + $0x18] sm:$0xf]
      %v226 = vld [vmem:[%s207 + $0x1c] sm:$0xf]
      %v227 = vld [vmem:[%s207 + $0x20] sm:$0xf]
      %v228 = vld [vmem:[%s1] sm:$0xf]
      %v229 = vld [vmem:[%s1 + $0x4] sm:$0xf]
      %s230 = scalar_lea.vmem %s207, 44
      %v231 = vld [vmem:[%s230] sm:$0xf]
      %v232 = vld [vmem:[%s230 + $0x4] sm:$0xf]
      %v233 = vld [vmem:[%s230 + $0x8] sm:$0xf]
      %v234 = vld [vmem:[%s230 + $0xc] sm:$0xf]
      %v235 = vld [vmem:[%s230 + $0x10] sm:$0xf]
      %v236 = vld [vmem:[%s230 + $0x14] sm:$0xf]
      %v237 = vld [vmem:[%s230 + $0x18] sm:$0xf]
      %v238 = vld [vmem:[%s230 + $0x1c] sm:$0xf]
      %v239 = vld [vmem:[%s230 + $0x20] sm:$0xf]
      %s240 = scalar_lea.vmem %s1, 8
      %v241 = vld [vmem:[%s240] sm:$0xf]
      %v242 = vld [vmem:[%s240 + $0x4] sm:$0xf]
      %v252 = vunpack.c.l.b16 %v231
      %v253 = vunpack.c.l.b16 %v232
      %v254 = vunpack.c.l.b16 %v233
      %v255 = vunpack.c.l.b16 %v234
      %v256 = vunpack.c.l.b16 %v235
      %v257 = vunpack.c.l.b16 %v236
      %v258 = vunpack.c.l.b16 %v237
      %v259 = vunpack.c.l.b16 %v238
      %v260 = vunpack.c.l.b16 %v239
      %v261 = vpack.c.b16 %v253, %v252
      %v262 = vpack.c.b16 %v255, %v254
      %v263 = vpack.c.b16 %v257, %v256
      %v264 = vpack.c.b16 %v259, %v258
      %v265 = vpack.c.b16 %v260, %v260
      %v268 = vunpack.c.l.b16 %v241
      %v269 = vunpack.c.l.b16 %v242
      %v270 = vpack.c.b16 %v269, %v268
      %vm272 = vcmask 130048
      %v274 = vsel %vm272, %v261, 0
      %v277 = vsel %vm272, %v262, 0
      %v280 = vsel %vm272, %v263, 0
      %v283 = vsel %vm272, %v264, 0
      %v286 = vsel %vm272, %v265, 0
      %288 = vmatprep.subr.bf16.mxu0 0
      %289 = vmatpush1.bf16.msra.mxu0 %v270
      %290 = vmatprep.subr.bf16.mxu0 0
      %291 = vmatpush1.bf16.msra.mxu0 0
      %292 = vmatprep.subr.bf16.mxu0 0
      %293 = vmatpush1.bf16.msra.mxu0 0
      %294 = vmatprep.subr.bf16.mxu0 0
      %295 = vmatpush1.bf16.msra.mxu0 0
      %296 = vmatprep.subr.bf16.mxu0 0
      %297 = vmatpush1.bf16.msra.mxu0 0
      %298 = vmatprep.subr.bf16.mxu0 0
      %299 = vmatpush1.bf16.msra.mxu0 0
      %300 = vmatprep.subr.bf16.mxu0 0
      %301 = vmatpush1.bf16.msra.mxu0 0
      %302 = vmatprep.subr.bf16.mxu0 0
      %303 = vmatpush1.bf16.msra.mxu0 0
      %304 = vmatprep.subr.bf16.mxu0 0
      %305 = vmatpush1.bf16.msra.mxu0 0
      %306 = vmatprep.subr.bf16.mxu0 0
      %307 = vmatpush1.bf16.msra.mxu0 0
      %308 = vmatprep.subr.bf16.mxu0 0
      %309 = vmatpush1.bf16.msra.mxu0 0
      %310 = vmatprep.subr.bf16.mxu0 0
      %311 = vmatpush1.bf16.msra.mxu0 0
      %312 = vmatprep.subr.bf16.mxu0 0
      %313 = vmatpush1.bf16.msra.mxu0 0
      %314 = vmatprep.subr.bf16.mxu0 0
      %315 = vmatpush1.bf16.msra.mxu0 0
      %316 = vmatprep.subr.bf16.mxu0 0
      %317 = vmatpush1.bf16.msra.mxu0 0
      %318 = vmatprep.subr.bf16.mxu0 0
      %319 = vmatpush1.bf16.msra.mxu0 0
      %320 = vmatprep.mubr.bf16.mxu0 0
      %321 = vmatmul.mubr.bf16.gmra.mrb[0].mxu0 %v274
      %v322 = vpop.f32.mrb[0].mxu0
      %v323 = vadd.f32 0.0, %v322
      %v324 = vpop.f32.mrb[0].mxu0
      %v325 = vpop.f32.mrb[0].mxu0
      %v326 = vadd.f32 0.0, %v325
      %v327 = vpop.f32.mrb[0].mxu0
      %328 = vmatprep.mubr.bf16.mxu0 0
      %329 = vmatmul.mubr.bf16.gmra.mrb[0].mxu0 %v277
      %v330 = vpop.f32.mrb[0].mxu0
      %v331 = vadd.f32 0.0, %v330
      %v332 = vpop.f32.mrb[0].mxu0
      %v333 = vpop.f32.mrb[0].mxu0
      %v334 = vadd.f32 0.0, %v333
      %v335 = vpop.f32.mrb[0].mxu0
      %336 = vmatprep.mubr.bf16.mxu0 0
      %337 = vmatmul.mubr.bf16.gmra.mrb[0].mxu0 %v280
      %v338 = vpop.f32.mrb[0].mxu0
      %v339 = vadd.f32 0.0, %v338
      %v340 = vpop.f32.mrb[0].mxu0
      %v341 = vpop.f32.mrb[0].mxu0
      %v342 = vadd.f32 0.0, %v341
      %v343 = vpop.f32.mrb[0].mxu0
      %344 = vmatprep.mubr.bf16.mxu0 0
      %345 = vmatmul.mubr.bf16.gmra.mrb[0].mxu0 %v283
      %v346 = vpop.f32.mrb[0].mxu0
      %v347 = vadd.f32 0.0, %v346
      %v348 = vpop.f32.mrb[0].mxu0
      %v349 = vpop.f32.mrb[0].mxu0
      %v350 = vadd.f32 0.0, %v349
      %v351 = vpop.f32.mrb[0].mxu0
      %352 = vmatprep.mubr.bf16.mxu0 0
      %353 = vmatmul.mubr.bf16.gmra.mrb[0].mxu0 %v286
      %v354 = vpop.f32.mrb[0].mxu0
      %v355 = vadd.f32 0.0, %v354
      %v356 = vpop.f32.mrb[0].mxu0
      %v357 = vpop.f32.mrb[0].mxu0
      %v358 = vpop.f32.mrb[0].mxu0
      %359 = vdwg.mxu0
      %v369 = vunpack.c.l.b16 %v219
      %v370 = vunpack.c.l.b16 %v220
      %v371 = vunpack.c.l.b16 %v221
      %v372 = vunpack.c.l.b16 %v222
      %v373 = vunpack.c.l.b16 %v223
      %v374 = vunpack.c.l.b16 %v224
      %v375 = vunpack.c.l.b16 %v225
      %v376 = vunpack.c.l.b16 %v226
      %v377 = vunpack.c.l.b16 %v227
      %v378 = vpack.c.b16 %v370, %v369
      %v379 = vpack.c.b16 %v372, %v371
      %v380 = vpack.c.b16 %v374, %v373
      %v381 = vpack.c.b16 %v376, %v375
      %v382 = vpack.c.b16 %v377, %v377
      %v385 = vunpack.c.l.b16 %v228
      %v386 = vunpack.c.l.b16 %v229
      %v387 = vpack.c.b16 %v386, %v385
      %v390 = vsel %vm272, %v378, 0
      %v393 = vsel %vm272, %v379, 0
      %v396 = vsel %vm272, %v380, 0
      %v399 = vsel %vm272, %v381, 0
      %v402 = vsel %vm272, %v382, 0
      %404 = vmatprep.subr.bf16.mxu0 0
      %405 = vmatpush1.bf16.msra.mxu0 %v387
      %406 = vmatprep.subr.bf16.mxu0 0
      %407 = vmatpush1.bf16.msra.mxu0 0
      %408 = vmatprep.subr.bf16.mxu0 0
      %409 = vmatpush1.bf16.msra.mxu0 0
      %410 = vmatprep.subr.bf16.mxu0 0
      %411 = vmatpush1.bf16.msra.mxu0 0
      %412 = vmatprep.subr.bf16.mxu0 0
      %413 = vmatpush1.bf16.msra.mxu0 0
      %414 = vmatprep.subr.bf16.mxu0 0
      %415 = vmatpush1.bf16.msra.mxu0 0
      %416 = vmatprep.subr.bf16.mxu0 0
      %417 = vmatpush1.bf16.msra.mxu0 0
      %418 = vmatprep.subr.bf16.mxu0 0
      %419 = vmatpush1.bf16.msra.mxu0 0
      %420 = vmatprep.subr.bf16.mxu0 0
      %421 = vmatpush1.bf16.msra.mxu0 0
      %422 = vmatprep.subr.bf16.mxu0 0
      %423 = vmatpush1.bf16.msra.mxu0 0
      %424 = vmatprep.subr.bf16.mxu0 0
      %425 = vmatpush1.bf16.msra.mxu0 0
      %426 = vmatprep.subr.bf16.mxu0 0
      %427 = vmatpush1.bf16.msra.mxu0 0
      %428 = vmatprep.subr.bf16.mxu0 0
      %429 = vmatpush1.bf16.msra.mxu0 0
      %430 = vmatprep.subr.bf16.mxu0 0
      %431 = vmatpush1.bf16.msra.mxu0 0
      %432 = vmatprep.subr.bf16.mxu0 0
      %433 = vmatpush1.bf16.msra.mxu0 0
      %434 = vmatprep.subr.bf16.mxu0 0
      %435 = vmatpush1.bf16.msra.mxu0 0
      %436 = vmatprep.mubr.bf16.mxu0 0
      %437 = vmatmul.mubr.bf16.gmra.mrb[0].mxu0 %v390
      %v438 = vpop.f32.mrb[0].mxu0
      %v439 = vadd.f32 %v323, %v438
      %v440 = vpop.f32.mrb[0].mxu0
      %v441 = vpop.f32.mrb[0].mxu0
      %v442 = vadd.f32 %v326, %v441
      %v443 = vpop.f32.mrb[0].mxu0
      %444 = vmatprep.mubr.bf16.mxu0 0
      %445 = vmatmul.mubr.bf16.gmra.mrb[0].mxu0 %v393
      %v446 = vpop.f32.mrb[0].mxu0
      %v447 = vadd.f32 %v331, %v446
      %v448 = vpop.f32.mrb[0].mxu0
      %v449 = vpop.f32.mrb[0].mxu0
      %v450 = vadd.f32 %v334, %v449
      %v451 = vpop.f32.mrb[0].mxu0
      %452 = vmatprep.mubr.bf16.mxu0 0
      %453 = vmatmul.mubr.bf16.gmra.mrb[0].mxu0 %v396
      %v454 = vpop.f32.mrb[0].mxu0
      %v455 = vadd.f32 %v339, %v454
      %v456 = vpop.f32.mrb[0].mxu0
      %v457 = vpop.f32.mrb[0].mxu0
      %v458 = vadd.f32 %v342, %v457
      %v459 = vpop.f32.mrb[0].mxu0
      %460 = vmatprep.mubr.bf16.mxu0 0
      %461 = vmatmul.mubr.bf16.gmra.mrb[0].mxu0 %v399
      %v462 = vpop.f32.mrb[0].mxu0
      %v463 = vadd.f32 %v347, %v462
      %v464 = vpop.f32.mrb[0].mxu0
      %v465 = vpop.f32.mrb[0].mxu0
      %v466 = vadd.f32 %v350, %v465
      %v467 = vpop.f32.mrb[0].mxu0
      %468 = vmatprep.mubr.bf16.mxu0 0
      %469 = vmatmul.mubr.bf16.gmra.mrb[0].mxu0 %v402
      %v470 = vpop.f32.mrb[0].mxu0
      %v471 = vadd.f32 %v355, %v470
      %v472 = vpop.f32.mrb[0].mxu0
      %v473 = vpop.f32.mrb[0].mxu0
      %v474 = vpop.f32.mrb[0].mxu0
      %475 = vdwg.mxu0
      %s476 = scalar_lea.vmem %s1, 16
      %v477 = vld [vmem:[%s476] sm:$0xf]
      %v478 = vld [vmem:[%s476 + $0x4] sm:$0xf]
      %vm479 = vsmask.f32 7424
      %v480 = vshrl.u32 %v378, 16
      %v482 = vshll.u32 %v378, 16
      %v484 = vrot.slane %v482, 1
      %v485 = vor.u32 %v480, %v484
      %v486 = vshll.u32 %v379, 16
      %v488 = vrot.slane %v486, 1
      %v489 = vsel %vm479, %v485, %v488
      %v490 = vshrl.u32 %v379, 16
      %v492 = vor.u32 %v490, %v488
      %v493 = vshll.u32 %v380, 16
      %v495 = vrot.slane %v493, 1
      %v496 = vsel %vm479, %v492, %v495
      %v497 = vshrl.u32 %v380, 16
      %v499 = vor.u32 %v497, %v495
      %v500 = vshll.u32 %v381, 16
      %v502 = vrot.slane %v500, 1
      %v503 = vsel %vm479, %v499, %v502
      %v504 = vshrl.u32 %v381, 16
      %v506 = vor.u32 %v504, %v502
      %v507 = vshll.u32 %v382, 16
      %v509 = vrot.slane %v507, 1
      %v510 = vsel %vm479, %v506, %v509
      %v511 = vshrl.u32 %v382, 16
      %v513 = vor.u32 %v511, %v509
      %v516 = vunpack.c.l.b16 %v477
      %v517 = vunpack.c.l.b16 %v478
      %v518 = vpack.c.b16 %v517, %v516
      %v521 = vsel %vm272, %v489, 0
      %v524 = vsel %vm272, %v496, 0
      %v527 = vsel %vm272, %v503, 0
      %v530 = vsel %vm272, %v510, 0
      %v533 = vsel %vm272, %v513, 0
      %535 = vmatprep.subr.bf16.mxu0 0
      %536 = vmatpush1.bf16.msra.mxu0 %v518
      %537 = vmatprep.subr.bf16.mxu0 0
      %538 = vmatpush1.bf16.msra.mxu0 0
      %539 = vmatprep.subr.bf16.mxu0 0
      %540 = vmatpush1.bf16.msra.mxu0 0
      %541 = vmatprep.subr.bf16.mxu0 0
      %542 = vmatpush1.bf16.msra.mxu0 0
      %543 = vmatprep.subr.bf16.mxu0 0
      %544 = vmatpush1.bf16.msra.mxu0 0
      %545 = vmatprep.subr.bf16.mxu0 0
      %546 = vmatpush1.bf16.msra.mxu0 0
      %547 = vmatprep.subr.bf16.mxu0 0
      %548 = vmatpush1.bf16.msra.mxu0 0
      %549 = vmatprep.subr.bf16.mxu0 0
      %550 = vmatpush1.bf16.msra.mxu0 0
      %551 = vmatprep.subr.bf16.mxu0 0
      %552 = vmatpush1.bf16.msra.mxu0 0
      %553 = vmatprep.subr.bf16.mxu0 0
      %554 = vmatpush1.bf16.msra.mxu0 0
      %555 = vmatprep.subr.bf16.mxu0 0
      %556 = vmatpush1.bf16.msra.mxu0 0
      %557 = vmatprep.subr.bf16.mxu0 0
      %558 = vmatpush1.bf16.msra.mxu0 0
      %559 = vmatprep.subr.bf16.mxu0 0
      %560 = vmatpush1.bf16.msra.mxu0 0
      %561 = vmatprep.subr.bf16.mxu0 0
      %562 = vmatpush1.bf16.msra.mxu0 0
      %563 = vmatprep.subr.bf16.mxu0 0
      %564 = vmatpush1.bf16.msra.mxu0 0
      %565 = vmatprep.subr.bf16.mxu0 0
      %566 = vmatpush1.bf16.msra.mxu0 0
      %567 = vmatprep.mubr.bf16.mxu0 0
      %568 = vmatmul.mubr.bf16.gmra.mrb[0].mxu0 %v521
      %v569 = vpop.f32.mrb[0].mxu0
      %v570 = vadd.f32 0.0, %v569
      %v571 = vpop.f32.mrb[0].mxu0
      %v572 = vpop.f32.mrb[0].mxu0
      %v573 = vadd.f32 0.0, %v572
      %v574 = vpop.f32.mrb[0].mxu0
      %575 = vmatprep.mubr.bf16.mxu0 0
      %576 = vmatmul.mubr.bf16.gmra.mrb[0].mxu0 %v524
      %v577 = vpop.f32.mrb[0].mxu0
      %v578 = vadd.f32 0.0, %v577
      %v579 = vpop.f32.mrb[0].mxu0
      %v580 = vpop.f32.mrb[0].mxu0
      %v581 = vadd.f32 0.0, %v580
      %v582 = vpop.f32.mrb[0].mxu0
      %583 = vmatprep.mubr.bf16.mxu0 0
      %584 = vmatmul.mubr.bf16.gmra.mrb[0].mxu0 %v527
      %v585 = vpop.f32.mrb[0].mxu0
      %v586 = vadd.f32 0.0, %v585
      %v587 = vpop.f32.mrb[0].mxu0
      %v588 = vpop.f32.mrb[0].mxu0
      %v589 = vadd.f32 0.0, %v588
      %v590 = vpop.f32.mrb[0].mxu0
      %591 = vmatprep.mubr.bf16.mxu0 0
      %592 = vmatmul.mubr.bf16.gmra.mrb[0].mxu0 %v530
      %v593 = vpop.f32.mrb[0].mxu0
      %v594 = vadd.f32 0.0, %v593
      %v595 = vpop.f32.mrb[0].mxu0
      %v596 = vpop.f32.mrb[0].mxu0
      %v597 = vadd.f32 0.0, %v596
      %v598 = vpop.f32.mrb[0].mxu0
      %599 = vmatprep.mubr.bf16.mxu0 0
      %600 = vmatmul.mubr.bf16.gmra.mrb[0].mxu0 %v533
      %v601 = vpop.f32.mrb[0].mxu0
      %v602 = vadd.f32 0.0, %v601
      %v603 = vpop.f32.mrb[0].mxu0
      %v604 = vpop.f32.mrb[0].mxu0
      %v605 = vpop.f32.mrb[0].mxu0
      %606 = vdwg.mxu0
      %v607 = vadd.f32 %v439, %v570
      %v608 = vadd.f32 %v442, %v573
      %v609 = vadd.f32 %v447, %v578
      %v610 = vadd.f32 %v450, %v581
      %v611 = vadd.f32 %v455, %v586
      %v612 = vadd.f32 %v458, %v589
      %v613 = vadd.f32 %v463, %v594
      %v614 = vadd.f32 %v466, %v597
      %v615 = vadd.f32 %v471, %v602
      %s616 = scalar_lea.vmem %s207, 88
      %v617 = vld [vmem:[%s616] sm:$0xf]
      %v618 = vld [vmem:[%s616 + $0x4] sm:$0xf]
      %v619 = vld [vmem:[%s616 + $0x8] sm:$0xf]
      %v620 = vld [vmem:[%s616 + $0xc] sm:$0xf]
      %v621 = vld [vmem:[%s616 + $0x10] sm:$0xf]
      %v622 = vld [vmem:[%s616 + $0x14] sm:$0xf]
      %v623 = vld [vmem:[%s616 + $0x18] sm:$0xf]
      %v624 = vld [vmem:[%s616 + $0x1c] sm:$0xf]
      %v625 = vld [vmem:[%s616 + $0x20] sm:$0xf]
      %s626 = scalar_lea.vmem %s1, 24
      %v627 = vld [vmem:[%s626] sm:$0xf]
      %v628 = vld [vmem:[%s626 + $0x4] sm:$0xf]
      %v638 = vunpack.c.l.b16 %v617
      %v639 = vunpack.c.l.b16 %v618
      %v640 = vunpack.c.l.b16 %v619
      %v641 = vunpack.c.l.b16 %v620
      %v642 = vunpack.c.l.b16 %v621
      %v643 = vunpack.c.l.b16 %v622
      %v644 = vunpack.c.l.b16 %v623
      %v645 = vunpack.c.l.b16 %v624
      %v646 = vunpack.c.l.b16 %v625
      %v647 = vpack.c.b16 %v639, %v638
      %v648 = vpack.c.b16 %v641, %v640
      %v649 = vpack.c.b16 %v643, %v642
      %v650 = vpack.c.b16 %v645, %v644
      %v651 = vpack.c.b16 %v646, %v646
      %v654 = vunpack.c.l.b16 %v627
      %v655 = vunpack.c.l.b16 %v628
      %v656 = vpack.c.b16 %v655, %v654
      %v659 = vsel %vm272, %v647, 0
      %v662 = vsel %vm272, %v648, 0
      %v665 = vsel %vm272, %v649, 0
      %v668 = vsel %vm272, %v650, 0
      %v671 = vsel %vm272, %v651, 0
      %673 = vmatprep.subr.bf16.mxu0 0
      %674 = vmatpush1.bf16.msra.mxu0 %v656
      %675 = vmatprep.subr.bf16.mxu0 0
      %676 = vmatpush1.bf16.msra.mxu0 0
      %677 = vmatprep.subr.bf16.mxu0 0
      %678 = vmatpush1.bf16.msra.mxu0 0
      %679 = vmatprep.subr.bf16.mxu0 0
      %680 = vmatpush1.bf16.msra.mxu0 0
      %681 = vmatprep.subr.bf16.mxu0 0
      %682 = vmatpush1.bf16.msra.mxu0 0
      %683 = vmatprep.subr.bf16.mxu0 0
      %684 = vmatpush1.bf16.msra.mxu0 0
      %685 = vmatprep.subr.bf16.mxu0 0
      %686 = vmatpush1.bf16.msra.mxu0 0
      %687 = vmatprep.subr.bf16.mxu0 0
      %688 = vmatpush1.bf16.msra.mxu0 0
      %689 = vmatprep.subr.bf16.mxu0 0
      %690 = vmatpush1.bf16.msra.mxu0 0
      %691 = vmatprep.subr.bf16.mxu0 0
      %692 = vmatpush1.bf16.msra.mxu0 0
      %693 = vmatprep.subr.bf16.mxu0 0
      %694 = vmatpush1.bf16.msra.mxu0 0
      %695 = vmatprep.subr.bf16.mxu0 0
      %696 = vmatpush1.bf16.msra.mxu0 0
      %697 = vmatprep.subr.bf16.mxu0 0
      %698 = vmatpush1.bf16.msra.mxu0 0
      %699 = vmatprep.subr.bf16.mxu0 0
      %700 = vmatpush1.bf16.msra.mxu0 0
      %701 = vmatprep.subr.bf16.mxu0 0
      %702 = vmatpush1.bf16.msra.mxu0 0
      %703 = vmatprep.subr.bf16.mxu0 0
      %704 = vmatpush1.bf16.msra.mxu0 0
      %705 = vmatprep.mubr.bf16.mxu0 0
      %706 = vmatmul.mubr.bf16.gmra.mrb[0].mxu0 %v659
      %v707 = vpop.f32.mrb[0].mxu0
      %v708 = vadd.f32 0.0, %v707
      %v709 = vpop.f32.mrb[0].mxu0
      %v710 = vpop.f32.mrb[0].mxu0
      %v711 = vadd.f32 0.0, %v710
      %v712 = vpop.f32.mrb[0].mxu0
      %713 = vmatprep.mubr.bf16.mxu0 0
      %714 = vmatmul.mubr.bf16.gmra.mrb[0].mxu0 %v662
      %v715 = vpop.f32.mrb[0].mxu0
      %v716 = vadd.f32 0.0, %v715
      %v717 = vpop.f32.mrb[0].mxu0
      %v718 = vpop.f32.mrb[0].mxu0
      %v719 = vadd.f32 0.0, %v718
      %v720 = vpop.f32.mrb[0].mxu0
      %721 = vmatprep.mubr.bf16.mxu0 0
      %722 = vmatmul.mubr.bf16.gmra.mrb[0].mxu0 %v665
      %v723 = vpop.f32.mrb[0].mxu0
      %v724 = vadd.f32 0.0, %v723
      %v725 = vpop.f32.mrb[0].mxu0
      %v726 = vpop.f32.mrb[0].mxu0
      %v727 = vadd.f32 0.0, %v726
      %v728 = vpop.f32.mrb[0].mxu0
      %729 = vmatprep.mubr.bf16.mxu0 0
      %730 = vmatmul.mubr.bf16.gmra.mrb[0].mxu0 %v668
      %v731 = vpop.f32.mrb[0].mxu0
      %v732 = vadd.f32 0.0, %v731
      %v733 = vpop.f32.mrb[0].mxu0
      %v734 = vpop.f32.mrb[0].mxu0
      %v735 = vadd.f32 0.0, %v734
      %v736 = vpop.f32.mrb[0].mxu0
      %737 = vmatprep.mubr.bf16.mxu0 0
      %738 = vmatmul.mubr.bf16.gmra.mrb[0].mxu0 %v671
      %v739 = vpop.f32.mrb[0].mxu0
      %v740 = vadd.f32 0.0, %v739
      %v741 = vpop.f32.mrb[0].mxu0
      %v742 = vpop.f32.mrb[0].mxu0
      %v743 = vpop.f32.mrb[0].mxu0
      %744 = vdwg.mxu0
      %v745 = vadd.f32 %v607, %v708
      %v746 = vadd.f32 %v608, %v711
      %v747 = vadd.f32 %v609, %v716
      %v748 = vadd.f32 %v610, %v719
      %v749 = vadd.f32 %v611, %v724
      %v750 = vadd.f32 %v612, %v727
      %v751 = vadd.f32 %v613, %v732
      %v752 = vadd.f32 %v614, %v735
      %v753 = vadd.f32 %v615, %v740
      %s754 = scalar_lea.vmem %s207, 132
      %v755 = vld [vmem:[%s754] sm:$0xf]
      %v756 = vld [vmem:[%s754 + $0x4] sm:$0xf]
      %v757 = vld [vmem:[%s754 + $0x8] sm:$0xf]
      %v758 = vld [vmem:[%s754 + $0xc] sm:$0xf]
      %v759 = vld [vmem:[%s754 + $0x10] sm:$0xf]
      %v760 = vld [vmem:[%s754 + $0x14] sm:$0xf]
      %v761 = vld [vmem:[%s754 + $0x18] sm:$0xf]
      %v762 = vld [vmem:[%s754 + $0x1c] sm:$0xf]
      %v763 = vld [vmem:[%s754 + $0x20] sm:$0xf]
      %s764 = scalar_lea.vmem %s1, 32
      %v765 = vld [vmem:[%s764] sm:$0xf]
      %v766 = vld [vmem:[%s764 + $0x4] sm:$0xf]
      %v776 = vunpack.c.l.b16 %v755
      %v777 = vunpack.c.l.b16 %v756
      %v778 = vunpack.c.l.b16 %v757
      %v779 = vunpack.c.l.b16 %v758
      %v780 = vunpack.c.l.b16 %v759
      %v781 = vunpack.c.l.b16 %v760
      %v782 = vunpack.c.l.b16 %v761
      %v783 = vunpack.c.l.b16 %v762
      %v784 = vunpack.c.l.b16 %v763
      %v785 = vpack.c.b16 %v777, %v776
      %v786 = vpack.c.b16 %v779, %v778
      %v787 = vpack.c.b16 %v781, %v780
      %v788 = vpack.c.b16 %v783, %v782
      %v789 = vpack.c.b16 %v784, %v784
      %v792 = vunpack.c.l.b16 %v765
      %v793 = vunpack.c.l.b16 %v766
      %v794 = vpack.c.b16 %v793, %v792
      %v797 = vsel %vm272, %v785, 0
      %v800 = vsel %vm272, %v786, 0
      %v803 = vsel %vm272, %v787, 0
      %v806 = vsel %vm272, %v788, 0
      %v809 = vsel %vm272, %v789, 0
      %811 = vmatprep.subr.bf16.mxu0 0
      %812 = vmatpush1.bf16.msra.mxu0 %v794
      %813 = vmatprep.subr.bf16.mxu0 0
      %814 = vmatpush1.bf16.msra.mxu0 0
      %815 = vmatprep.subr.bf16.mxu0 0
      %816 = vmatpush1.bf16.msra.mxu0 0
      %817 = vmatprep.subr.bf16.mxu0 0
      %818 = vmatpush1.bf16.msra.mxu0 0
      %819 = vmatprep.subr.bf16.mxu0 0
      %820 = vmatpush1.bf16.msra.mxu0 0
      %821 = vmatprep.subr.bf16.mxu0 0
      %822 = vmatpush1.bf16.msra.mxu0 0
      %823 = vmatprep.subr.bf16.mxu0 0
      %824 = vmatpush1.bf16.msra.mxu0 0
      %825 = vmatprep.subr.bf16.mxu0 0
      %826 = vmatpush1.bf16.msra.mxu0 0
      %827 = vmatprep.subr.bf16.mxu0 0
      %828 = vmatpush1.bf16.msra.mxu0 0
      %829 = vmatprep.subr.bf16.mxu0 0
      %830 = vmatpush1.bf16.msra.mxu0 0
      %831 = vmatprep.subr.bf16.mxu0 0
      %832 = vmatpush1.bf16.msra.mxu0 0
      %833 = vmatprep.subr.bf16.mxu0 0
      %834 = vmatpush1.bf16.msra.mxu0 0
      %835 = vmatprep.subr.bf16.mxu0 0
      %836 = vmatpush1.bf16.msra.mxu0 0
      %837 = vmatprep.subr.bf16.mxu0 0
      %838 = vmatpush1.bf16.msra.mxu0 0
      %839 = vmatprep.subr.bf16.mxu0 0
      %840 = vmatpush1.bf16.msra.mxu0 0
      %841 = vmatprep.subr.bf16.mxu0 0
      %842 = vmatpush1.bf16.msra.mxu0 0
      %843 = vmatprep.mubr.bf16.mxu0 0
      %844 = vmatmul.mubr.bf16.gmra.mrb[0].mxu0 %v797
      %v845 = vpop.f32.mrb[0].mxu0
      %v846 = vadd.f32 0.0, %v845
      %v847 = vpop.f32.mrb[0].mxu0
      %v848 = vpop.f32.mrb[0].mxu0
      %v849 = vadd.f32 0.0, %v848
      %v850 = vpop.f32.mrb[0].mxu0
      %851 = vmatprep.mubr.bf16.mxu0 0
      %852 = vmatmul.mubr.bf16.gmra.mrb[0].mxu0 %v800
      %v853 = vpop.f32.mrb[0].mxu0
      %v854 = vadd.f32 0.0, %v853
      %v855 = vpop.f32.mrb[0].mxu0
      %v856 = vpop.f32.mrb[0].mxu0
      %v857 = vadd.f32 0.0, %v856
      %v858 = vpop.f32.mrb[0].mxu0
      %859 = vmatprep.mubr.bf16.mxu0 0
      %860 = vmatmul.mubr.bf16.gmra.mrb[0].mxu0 %v803
      %v861 = vpop.f32.mrb[0].mxu0
      %v862 = vadd.f32 0.0, %v861
      %v863 = vpop.f32.mrb[0].mxu0
      %v864 = vpop.f32.mrb[0].mxu0
      %v865 = vadd.f32 0.0, %v864
      %v866 = vpop.f32.mrb[0].mxu0
      %867 = vmatprep.mubr.bf16.mxu0 0
      %868 = vmatmul.mubr.bf16.gmra.mrb[0].mxu0 %v806
      %v869 = vpop.f32.mrb[0].mxu0
      %v870 = vadd.f32 0.0, %v869
      %v871 = vpop.f32.mrb[0].mxu0
      %v872 = vpop.f32.mrb[0].mxu0
      %v873 = vadd.f32 0.0, %v872
      %v874 = vpop.f32.mrb[0].mxu0
      %875 = vmatprep.mubr.bf16.mxu0 0
      %876 = vmatmul.mubr.bf16.gmra.mrb[0].mxu0 %v809
      %v877 = vpop.f32.mrb[0].mxu0
      %v878 = vadd.f32 0.0, %v877
      %v879 = vpop.f32.mrb[0].mxu0
      %v880 = vpop.f32.mrb[0].mxu0
      %v881 = vpop.f32.mrb[0].mxu0
      %882 = vdwg.mxu0
      %v883 = vadd.f32 %v745, %v846
      %v884 = vadd.f32 %v746, %v849
      %v885 = vadd.f32 %v747, %v854
      %v886 = vadd.f32 %v748, %v857
      %v887 = vadd.f32 %v749, %v862
      %v888 = vadd.f32 %v750, %v865
      %v889 = vadd.f32 %v751, %v870
      %v890 = vadd.f32 %v752, %v873
      %v891 = vadd.f32 %v753, %v878
      %s892 = scalar_lea.vmem %s1, 40
      %v893 = vld [vmem:[%s892] sm:$0xf]
      %v894 = vld [vmem:[%s892 + $0x4] sm:$0xf]
      %v895 = vshrl.u32 %v647, 16
      %v897 = vshll.u32 %v647, 16
      %v899 = vrot.slane %v897, 1
      %v900 = vor.u32 %v895, %v899
      %v901 = vshll.u32 %v648, 16
      %v903 = vrot.slane %v901, 1
      %v904 = vsel %vm479, %v900, %v903
      %v905 = vshrl.u32 %v648, 16
      %v907 = vor.u32 %v905, %v903
      %v908 = vshll.u32 %v649, 16
      %v910 = vrot.slane %v908, 1
      %v911 = vsel %vm479, %v907, %v910
      %v912 = vshrl.u32 %v649, 16
      %v914 = vor.u32 %v912, %v910
      %v915 = vshll.u32 %v650, 16
      %v917 = vrot.slane %v915, 1
      %v918 = vsel %vm479, %v914, %v917
      %v919 = vshrl.u32 %v650, 16
      %v921 = vor.u32 %v919, %v917
      %v922 = vshll.u32 %v651, 16
      %v924 = vrot.slane %v922, 1
      %v925 = vsel %vm479, %v921, %v924
      %v926 = vshrl.u32 %v651, 16
      %v928 = vor.u32 %v926, %v924
      %v931 = vunpack.c.l.b16 %v893
      %v932 = vunpack.c.l.b16 %v894
      %v933 = vpack.c.b16 %v932, %v931
      %v936 = vsel %vm272, %v904, 0
      %v939 = vsel %vm272, %v911, 0
      %v942 = vsel %vm272, %v918, 0
      %v945 = vsel %vm272, %v925, 0
      %v948 = vsel %vm272, %v928, 0
      %950 = vmatprep.subr.bf16.mxu0 0
      %951 = vmatpush1.bf16.msra.mxu0 %v933
      %952 = vmatprep.subr.bf16.mxu0 0
      %953 = vmatpush1.bf16.msra.mxu0 0
      %954 = vmatprep.subr.bf16.mxu0 0
      %955 = vmatpush1.bf16.msra.mxu0 0
      %956 = vmatprep.subr.bf16.mxu0 0
      %957 = vmatpush1.bf16.msra.mxu0 0
      %958 = vmatprep.subr.bf16.mxu0 0
      %959 = vmatpush1.bf16.msra.mxu0 0
      %960 = vmatprep.subr.bf16.mxu0 0
      %961 = vmatpush1.bf16.msra.mxu0 0
      %962 = vmatprep.subr.bf16.mxu0 0
      %963 = vmatpush1.bf16.msra.mxu0 0
      %964 = vmatprep.subr.bf16.mxu0 0
      %965 = vmatpush1.bf16.msra.mxu0 0
      %966 = vmatprep.subr.bf16.mxu0 0
      %967 = vmatpush1.bf16.msra.mxu0 0
      %968 = vmatprep.subr.bf16.mxu0 0
      %969 = vmatpush1.bf16.msra.mxu0 0
      %970 = vmatprep.subr.bf16.mxu0 0
      %971 = vmatpush1.bf16.msra.mxu0 0
      %972 = vmatprep.subr.bf16.mxu0 0
      %973 = vmatpush1.bf16.msra.mxu0 0
      %974 = vmatprep.subr.bf16.mxu0 0
      %975 = vmatpush1.bf16.msra.mxu0 0
      %976 = vmatprep.subr.bf16.mxu0 0
      %977 = vmatpush1.bf16.msra.mxu0 0
      %978 = vmatprep.subr.bf16.mxu0 0
      %979 = vmatpush1.bf16.msra.mxu0 0
      %980 = vmatprep.subr.bf16.mxu0 0
      %981 = vmatpush1.bf16.msra.mxu0 0
      %982 = vmatprep.mubr.bf16.mxu0 0
      %983 = vmatmul.mubr.bf16.gmra.mrb[0].mxu0 %v936
      %v984 = vpop.f32.mrb[0].mxu0
      %v985 = vadd.f32 0.0, %v984
      %v986 = vpop.f32.mrb[0].mxu0
      %v987 = vpop.f32.mrb[0].mxu0
      %v988 = vadd.f32 0.0, %v987
      %v989 = vpop.f32.mrb[0].mxu0
      %990 = vmatprep.mubr.bf16.mxu0 0
      %991 = vmatmul.mubr.bf16.gmra.mrb[0].mxu0 %v939
      %v992 = vpop.f32.mrb[0].mxu0
      %v993 = vadd.f32 0.0, %v992
      %v994 = vpop.f32.mrb[0].mxu0
      %v995 = vpop.f32.mrb[0].mxu0
      %v996 = vadd.f32 0.0, %v995
      %v997 = vpop.f32.mrb[0].mxu0
      %998 = vmatprep.mubr.bf16.mxu0 0
      %999 = vmatmul.mubr.bf16.gmra.mrb[0].mxu0 %v942
      %v1000 = vpop.f32.mrb[0].mxu0
      %v1001 = vadd.f32 0.0, %v1000
      %v1002 = vpop.f32.mrb[0].mxu0
      %v1003 = vpop.f32.mrb[0].mxu0
      %v1004 = vadd.f32 0.0, %v1003
      %v1005 = vpop.f32.mrb[0].mxu0
      %1006 = vmatprep.mubr.bf16.mxu0 0
      %1007 = vmatmul.mubr.bf16.gmra.mrb[0].mxu0 %v945
      %v1008 = vpop.f32.mrb[0].mxu0
      %v1009 = vadd.f32 0.0, %v1008
      %v1010 = vpop.f32.mrb[0].mxu0
      %v1011 = vpop.f32.mrb[0].mxu0
      %v1012 = vadd.f32 0.0, %v1011
      %v1013 = vpop.f32.mrb[0].mxu0
      %1014 = vmatprep.mubr.bf16.mxu0 0
      %1015 = vmatmul.mubr.bf16.gmra.mrb[0].mxu0 %v948
      %v1016 = vpop.f32.mrb[0].mxu0
      %v1017 = vadd.f32 0.0, %v1016
      %v1018 = vpop.f32.mrb[0].mxu0
      %v1019 = vpop.f32.mrb[0].mxu0
      %v1020 = vpop.f32.mrb[0].mxu0
      %1021 = vdwg.mxu0
      %v1022 = vadd.f32 %v883, %v985
      %v1023 = vadd.f32 %v884, %v988
      %v1024 = vadd.f32 %v885, %v993
      %v1025 = vadd.f32 %v886, %v996
      %v1026 = vadd.f32 %v887, %v1001
      %v1027 = vadd.f32 %v888, %v1004
      %v1028 = vadd.f32 %v889, %v1009
      %v1029 = vadd.f32 %v890, %v1012
      %v1030 = vadd.f32 %v891, %v1017
      %v1031 = vld [vmem:[%s207 + $0x4] sm:$0xf]
      %v1032 = vld [vmem:[%s207 + $0x8] sm:$0xf]
      %v1033 = vld [vmem:[%s207 + $0xc] sm:$0xf]
      %v1034 = vld [vmem:[%s207 + $0x10] sm:$0xf]
      %v1035 = vld [vmem:[%s207 + $0x14] sm:$0xf]
      %v1036 = vld [vmem:[%s207 + $0x18] sm:$0xf]
      %v1037 = vld [vmem:[%s207 + $0x1c] sm:$0xf]
      %v1038 = vld [vmem:[%s207 + $0x20] sm:$0xf]
      %v1039 = vld [vmem:[%s207 + $0x24] sm:$0xf]
      %s1040 = scalar_lea.vmem %s1, 48
      %v1041 = vld [vmem:[%s1040] sm:$0xf]
      %v1042 = vld [vmem:[%s1040 + $0x4] sm:$0xf]
      %v1052 = vunpack.c.l.b16 %v1031
      %v1053 = vunpack.c.l.b16 %v1032
      %v1054 = vunpack.c.l.b16 %v1033
      %v1055 = vunpack.c.l.b16 %v1034
      %v1056 = vunpack.c.l.b16 %v1035
      %v1057 = vunpack.c.l.b16 %v1036
      %v1058 = vunpack.c.l.b16 %v1037
      %v1059 = vunpack.c.l.b16 %v1038
      %v1060 = vunpack.c.l.b16 %v1039
      %v1061 = vpack.c.b16 %v1053, %v1052
      %v1062 = vpack.c.b16 %v1055, %v1054
      %v1063 = vpack.c.b16 %v1057, %v1056
      %v1064 = vpack.c.b16 %v1059, %v1058
      %v1065 = vpack.c.b16 %v1060, %v1060
      %v1067 = vshrl.u32 %v1061, 16
      %v1069 = vshll.u32 %v1061, 16
      %v1071 = vrot.slane %v1069, 1
      %v1072 = vor.u32 %v1067, %v1071
      %v1074 = vshll.u32 %v1062, 16
      %v1076 = vrot.slane %v1074, 1
      %v1077 = vsel %vm479, %v1072, %v1076
      %v1078 = vshrl.u32 %v1062, 16
      %v1080 = vor.u32 %v1078, %v1076
      %v1082 = vshll.u32 %v1063, 16
      %v1084 = vrot.slane %v1082, 1
      %v1085 = vsel %vm479, %v1080, %v1084
      %v1086 = vshrl.u32 %v1063, 16
      %v1088 = vor.u32 %v1086, %v1084
      %v1090 = vshll.u32 %v1064, 16
      %v1092 = vrot.slane %v1090, 1
      %v1093 = vsel %vm479, %v1088, %v1092
      %v1094 = vshrl.u32 %v1064, 16
      %v1096 = vor.u32 %v1094, %v1092
      %v1098 = vshll.u32 %v1065, 16
      %v1100 = vrot.slane %v1098, 1
      %v1101 = vsel %vm479, %v1096, %v1100
      %v1102 = vshrl.u32 %v1065, 16
      %v1104 = vor.u32 %v1102, %v1100
      %v1107 = vunpack.c.l.b16 %v1041
      %v1108 = vunpack.c.l.b16 %v1042
      %v1109 = vpack.c.b16 %v1108, %v1107
      %v1112 = vsel %vm272, %v1077, 0
      %v1115 = vsel %vm272, %v1085, 0
      %v1118 = vsel %vm272, %v1093, 0
      %v1121 = vsel %vm272, %v1101, 0
      %v1124 = vsel %vm272, %v1104, 0
      %1126 = vmatprep.subr.bf16.mxu0 0
      %1127 = vmatpush1.bf16.msra.mxu0 %v1109
      %1128 = vmatprep.subr.bf16.mxu0 0
      %1129 = vmatpush1.bf16.msra.mxu0 0
      %1130 = vmatprep.subr.bf16.mxu0 0
      %1131 = vmatpush1.bf16.msra.mxu0 0
      %1132 = vmatprep.subr.bf16.mxu0 0
      %1133 = vmatpush1.bf16.msra.mxu0 0
      %1134 = vmatprep.subr.bf16.mxu0 0
      %1135 = vmatpush1.bf16.msra.mxu0 0
      %1136 = vmatprep.subr.bf16.mxu0 0
      %1137 = vmatpush1.bf16.msra.mxu0 0
      %1138 = vmatprep.subr.bf16.mxu0 0
      %1139 = vmatpush1.bf16.msra.mxu0 0
      %1140 = vmatprep.subr.bf16.mxu0 0
      %1141 = vmatpush1.bf16.msra.mxu0 0
      %1142 = vmatprep.subr.bf16.mxu0 0
      %1143 = vmatpush1.bf16.msra.mxu0 0
      %1144 = vmatprep.subr.bf16.mxu0 0
      %1145 = vmatpush1.bf16.msra.mxu0 0
      %1146 = vmatprep.subr.bf16.mxu0 0
      %1147 = vmatpush1.bf16.msra.mxu0 0
      %1148 = vmatprep.subr.bf16.mxu0 0
      %1149 = vmatpush1.bf16.msra.mxu0 0
      %1150 = vmatprep.subr.bf16.mxu0 0
      %1151 = vmatpush1.bf16.msra.mxu0 0
      %1152 = vmatprep.subr.bf16.mxu0 0
      %1153 = vmatpush1.bf16.msra.mxu0 0
      %1154 = vmatprep.subr.bf16.mxu0 0
      %1155 = vmatpush1.bf16.msra.mxu0 0
      %1156 = vmatprep.subr.bf16.mxu0 0
      %1157 = vmatpush1.bf16.msra.mxu0 0
      %1158 = vmatprep.mubr.bf16.mxu0 0
      %1159 = vmatmul.mubr.bf16.gmra.mrb[0].mxu0 %v1112
      %v1160 = vpop.f32.mrb[0].mxu0
      %v1161 = vadd.f32 0.0, %v1160
      %v1162 = vpop.f32.mrb[0].mxu0
      %v1163 = vpop.f32.mrb[0].mxu0
      %v1164 = vadd.f32 0.0, %v1163
      %v1165 = vpop.f32.mrb[0].mxu0
      %1166 = vmatprep.mubr.bf16.mxu0 0
      %1167 = vmatmul.mubr.bf16.gmra.mrb[0].mxu0 %v1115
      %v1168 = vpop.f32.mrb[0].mxu0
      %v1169 = vadd.f32 0.0, %v1168
      %v1170 = vpop.f32.mrb[0].mxu0
      %v1171 = vpop.f32.mrb[0].mxu0
      %v1172 = vadd.f32 0.0, %v1171
      %v1173 = vpop.f32.mrb[0].mxu0
      %1174 = vmatprep.mubr.bf16.mxu0 0
      %1175 = vmatmul.mubr.bf16.gmra.mrb[0].mxu0 %v1118
      %v1176 = vpop.f32.mrb[0].mxu0
      %v1177 = vadd.f32 0.0, %v1176
      %v1178 = vpop.f32.mrb[0].mxu0
      %v1179 = vpop.f32.mrb[0].mxu0
      %v1180 = vadd.f32 0.0, %v1179
      %v1181 = vpop.f32.mrb[0].mxu0
      %1182 = vmatprep.mubr.bf16.mxu0 0
      %1183 = vmatmul.mubr.bf16.gmra.mrb[0].mxu0 %v1121
      %v1184 = vpop.f32.mrb[0].mxu0
      %v1185 = vadd.f32 0.0, %v1184
      %v1186 = vpop.f32.mrb[0].mxu0
      %v1187 = vpop.f32.mrb[0].mxu0
      %v1188 = vadd.f32 0.0, %v1187
      %v1189 = vpop.f32.mrb[0].mxu0
      %1190 = vmatprep.mubr.bf16.mxu0 0
      %1191 = vmatmul.mubr.bf16.gmra.mrb[0].mxu0 %v1124
      %v1192 = vpop.f32.mrb[0].mxu0
      %v1193 = vadd.f32 0.0, %v1192
      %v1194 = vpop.f32.mrb[0].mxu0
      %v1195 = vpop.f32.mrb[0].mxu0
      %v1196 = vpop.f32.mrb[0].mxu0
      %1197 = vdwg.mxu0
      %v1198 = vadd.f32 %v1022, %v1161
      %v1199 = vadd.f32 %v1023, %v1164
      %v1200 = vadd.f32 %v1024, %v1169
      %v1201 = vadd.f32 %v1025, %v1172
      %v1202 = vadd.f32 %v1026, %v1177
      %v1203 = vadd.f32 %v1027, %v1180
      %v1204 = vadd.f32 %v1028, %v1185
      %v1205 = vadd.f32 %v1029, %v1188
      %v1206 = vadd.f32 %v1030, %v1193
      %v1207 = vld [vmem:[%s230 + $0x4] sm:$0xf]
      %v1208 = vld [vmem:[%s230 + $0x8] sm:$0xf]
      %v1209 = vld [vmem:[%s230 + $0xc] sm:$0xf]
      %v1210 = vld [vmem:[%s230 + $0x10] sm:$0xf]
      %v1211 = vld [vmem:[%s230 + $0x14] sm:$0xf]
      %v1212 = vld [vmem:[%s230 + $0x18] sm:$0xf]
      %v1213 = vld [vmem:[%s230 + $0x1c] sm:$0xf]
      %v1214 = vld [vmem:[%s230 + $0x20] sm:$0xf]
      %v1215 = vld [vmem:[%s230 + $0x24] sm:$0xf]
      %s1216 = scalar_lea.vmem %s1, 56
      %v1217 = vld [vmem:[%s1216] sm:$0xf]
      %v1218 = vld [vmem:[%s1216 + $0x4] sm:$0xf]
      %v1228 = vunpack.c.l.b16 %v1207
      %v1229 = vunpack.c.l.b16 %v1208
      %v1230 = vunpack.c.l.b16 %v1209
      %v1231 = vunpack.c.l.b16 %v1210
      %v1232 = vunpack.c.l.b16 %v1211
      %v1233 = vunpack.c.l.b16 %v1212
      %v1234 = vunpack.c.l.b16 %v1213
      %v1235 = vunpack.c.l.b16 %v1214
      %v1236 = vunpack.c.l.b16 %v1215
      %v1237 = vpack.c.b16 %v1229, %v1228
      %v1238 = vpack.c.b16 %v1231, %v1230
      %v1239 = vpack.c.b16 %v1233, %v1232
      %v1240 = vpack.c.b16 %v1235, %v1234
      %v1241 = vpack.c.b16 %v1236, %v1236
      %v1243 = vshrl.u32 %v1237, 16
      %v1245 = vshll.u32 %v1237, 16
      %v1247 = vrot.slane %v1245, 1
      %v1248 = vor.u32 %v1243, %v1247
      %v1250 = vshll.u32 %v1238, 16
      %v1252 = vrot.slane %v1250, 1
      %v1253 = vsel %vm479, %v1248, %v1252
      %v1254 = vshrl.u32 %v1238, 16
      %v1256 = vor.u32 %v1254, %v1252
      %v1258 = vshll.u32 %v1239, 16
      %v1260 = vrot.slane %v1258, 1
      %v1261 = vsel %vm479, %v1256, %v1260
      %v1262 = vshrl.u32 %v1239, 16
      %v1264 = vor.u32 %v1262, %v1260
      %v1266 = vshll.u32 %v1240, 16
      %v1268 = vrot.slane %v1266, 1
      %v1269 = vsel %vm479, %v1264, %v1268
      %v1270 = vshrl.u32 %v1240, 16
      %v1272 = vor.u32 %v1270, %v1268
      %v1274 = vshll.u32 %v1241, 16
      %v1276 = vrot.slane %v1274, 1
      %v1277 = vsel %vm479, %v1272, %v1276
      %v1278 = vshrl.u32 %v1241, 16
      %v1280 = vor.u32 %v1278, %v1276
      %v1283 = vunpack.c.l.b16 %v1217
      %v1284 = vunpack.c.l.b16 %v1218
      %v1285 = vpack.c.b16 %v1284, %v1283
      %v1288 = vsel %vm272, %v1253, 0
      %v1291 = vsel %vm272, %v1261, 0
      %v1294 = vsel %vm272, %v1269, 0
      %v1297 = vsel %vm272, %v1277, 0
      %v1300 = vsel %vm272, %v1280, 0
      %1302 = vmatprep.subr.bf16.mxu0 0
      %1303 = vmatpush1.bf16.msra.mxu0 %v1285
      %1304 = vmatprep.subr.bf16.mxu0 0
      %1305 = vmatpush1.bf16.msra.mxu0 0
      %1306 = vmatprep.subr.bf16.mxu0 0
      %1307 = vmatpush1.bf16.msra.mxu0 0
      %1308 = vmatprep.subr.bf16.mxu0 0
      %1309 = vmatpush1.bf16.msra.mxu0 0
      %1310 = vmatprep.subr.bf16.mxu0 0
      %1311 = vmatpush1.bf16.msra.mxu0 0
      %1312 = vmatprep.subr.bf16.mxu0 0
      %1313 = vmatpush1.bf16.msra.mxu0 0
      %1314 = vmatprep.subr.bf16.mxu0 0
      %1315 = vmatpush1.bf16.msra.mxu0 0
      %1316 = vmatprep.subr.bf16.mxu0 0
      %1317 = vmatpush1.bf16.msra.mxu0 0
      %1318 = vmatprep.subr.bf16.mxu0 0
      %1319 = vmatpush1.bf16.msra.mxu0 0
      %1320 = vmatprep.subr.bf16.mxu0 0
      %1321 = vmatpush1.bf16.msra.mxu0 0
      %1322 = vmatprep.subr.bf16.mxu0 0
      %1323 = vmatpush1.bf16.msra.mxu0 0
      %1324 = vmatprep.subr.bf16.mxu0 0
      %1325 = vmatpush1.bf16.msra.mxu0 0
      %1326 = vmatprep.subr.bf16.mxu0 0
      %1327 = vmatpush1.bf16.msra.mxu0 0
      %1328 = vmatprep.subr.bf16.mxu0 0
      %1329 = vmatpush1.bf16.msra.mxu0 0
      %1330 = vmatprep.subr.bf16.mxu0 0
      %1331 = vmatpush1.bf16.msra.mxu0 0
      %1332 = vmatprep.subr.bf16.mxu0 0
      %1333 = vmatpush1.bf16.msra.mxu0 0
      %1334 = vmatprep.mubr.bf16.mxu0 0
      %1335 = vmatmul.mubr.bf16.gmra.mrb[0].mxu0 %v1288
      %v1336 = vpop.f32.mrb[0].mxu0
      %v1337 = vadd.f32 0.0, %v1336
      %v1338 = vpop.f32.mrb[0].mxu0
      %v1339 = vpop.f32.mrb[0].mxu0
      %v1340 = vadd.f32 0.0, %v1339
      %v1341 = vpop.f32.mrb[0].mxu0
      %1342 = vmatprep.mubr.bf16.mxu0 0
      %1343 = vmatmul.mubr.bf16.gmra.mrb[0].mxu0 %v1291
      %v1344 = vpop.f32.mrb[0].mxu0
      %v1345 = vadd.f32 0.0, %v1344
      %v1346 = vpop.f32.mrb[0].mxu0
      %v1347 = vpop.f32.mrb[0].mxu0
      %v1348 = vadd.f32 0.0, %v1347
      %v1349 = vpop.f32.mrb[0].mxu0
      %1350 = vmatprep.mubr.bf16.mxu0 0
      %1351 = vmatmul.mubr.bf16.gmra.mrb[0].mxu0 %v1294
      %v1352 = vpop.f32.mrb[0].mxu0
      %v1353 = vadd.f32 0.0, %v1352
      %v1354 = vpop.f32.mrb[0].mxu0
      %v1355 = vpop.f32.mrb[0].mxu0
      %v1356 = vadd.f32 0.0, %v1355
      %v1357 = vpop.f32.mrb[0].mxu0
      %1358 = vmatprep.mubr.bf16.mxu0 0
      %1359 = vmatmul.mubr.bf16.gmra.mrb[0].mxu0 %v1297
      %v1360 = vpop.f32.mrb[0].mxu0
      %v1361 = vadd.f32 0.0, %v1360
      %v1362 = vpop.f32.mrb[0].mxu0
      %v1363 = vpop.f32.mrb[0].mxu0
      %v1364 = vadd.f32 0.0, %v1363
      %v1365 = vpop.f32.mrb[0].mxu0
      %1366 = vmatprep.mubr.bf16.mxu0 0
      %1367 = vmatmul.mubr.bf16.gmra.mrb[0].mxu0 %v1300
      %v1368 = vpop.f32.mrb[0].mxu0
      %v1369 = vadd.f32 0.0, %v1368
      %v1370 = vpop.f32.mrb[0].mxu0
      %v1371 = vpop.f32.mrb[0].mxu0
      %v1372 = vpop.f32.mrb[0].mxu0
      %1373 = vdwg.mxu0
      %v1374 = vadd.f32 %v1198, %v1337
      %v1375 = vadd.f32 %v1199, %v1340
      %v1376 = vadd.f32 %v1200, %v1345
      %v1377 = vadd.f32 %v1201, %v1348
      %v1378 = vadd.f32 %v1202, %v1353
      %v1379 = vadd.f32 %v1203, %v1356
      %v1380 = vadd.f32 %v1204, %v1361
      %v1381 = vadd.f32 %v1205, %v1364
      %v1382 = vadd.f32 %v1206, %v1369
      %v1383 = vld [vmem:[%s207 + $0x4] sm:$0xe]
      %v1384 = vld [vmem:[%s207 + $0x8] sm:$0xf]
      %v1385 = vld [vmem:[%s207 + $0xc] sm:$0xf]
      %v1386 = vld [vmem:[%s207 + $0x10] sm:$0xf]
      %v1387 = vld [vmem:[%s207 + $0x14] sm:$0xf]
      %v1388 = vld [vmem:[%s207 + $0x18] sm:$0xf]
      %v1389 = vld [vmem:[%s207 + $0x1c] sm:$0xf]
      %v1390 = vld [vmem:[%s207 + $0x20] sm:$0xf]
      %v1391 = vld [vmem:[%s207 + $0x24] sm:$0xf]
      %v1392 = vld [vmem:[%s207 + $0x28] sm:$0x1]
      %s1393 = scalar_lea.vmem %s1, 64
      %v1394 = vld [vmem:[%s1393] sm:$0xf]
      %v1395 = vld [vmem:[%s1393 + $0x4] sm:$0xf]
      %v1406 = vunpack.c.l.b16 %v1383
      %v1407 = vunpack.c.l.b16 %v1384
      %v1408 = vunpack.c.l.b16 %v1385
      %v1409 = vunpack.c.l.b16 %v1386
      %v1410 = vunpack.c.l.b16 %v1387
      %v1411 = vunpack.c.l.b16 %v1388
      %v1412 = vunpack.c.l.b16 %v1389
      %v1413 = vunpack.c.l.b16 %v1390
      %v1414 = vunpack.c.l.b16 %v1391
      %v1415 = vunpack.c.l.b16 %v1392
      %v1416 = vpack.c.b16 %v1407, %v1406
      %v1417 = vpack.c.b16 %v1409, %v1408
      %v1418 = vpack.c.b16 %v1411, %v1410
      %v1419 = vpack.c.b16 %v1413, %v1412
      %v1420 = vpack.c.b16 %v1415, %v1414
      %vm1421 = vcmask 1046528
      %v1422 = vrot.slane %v1416, 1
      %v1423 = vrot.slane %v1417, 1
      %v1424 = vsel %vm1421, %v1422, %v1423
      %v1425 = vrot.slane %v1418, 1
      %v1426 = vsel %vm1421, %v1423, %v1425
      %v1427 = vrot.slane %v1419, 1
      %v1428 = vsel %vm1421, %v1425, %v1427
      %v1429 = vrot.slane %v1420, 1
      %v1430 = vsel %vm1421, %v1427, %v1429
      %v1433 = vunpack.c.l.b16 %v1394
      %v1434 = vunpack.c.l.b16 %v1395
      %v1435 = vpack.c.b16 %v1434, %v1433
      %v1438 = vsel %vm272, %v1424, 0
      %v1441 = vsel %vm272, %v1426, 0
      %v1444 = vsel %vm272, %v1428, 0
      %v1447 = vsel %vm272, %v1430, 0
      %v1450 = vsel %vm272, %v1429, 0
      %1452 = vmatprep.subr.bf16.mxu0 0
      %1453 = vmatpush1.bf16.msra.mxu0 %v1435
      %1454 = vmatprep.subr.bf16.mxu0 0
      %1455 = vmatpush1.bf16.msra.mxu0 0
      %1456 = vmatprep.subr.bf16.mxu0 0
      %1457 = vmatpush1.bf16.msra.mxu0 0
      %1458 = vmatprep.subr.bf16.mxu0 0
      %1459 = vmatpush1.bf16.msra.mxu0 0
      %1460 = vmatprep.subr.bf16.mxu0 0
      %1461 = vmatpush1.bf16.msra.mxu0 0
      %1462 = vmatprep.subr.bf16.mxu0 0
      %1463 = vmatpush1.bf16.msra.mxu0 0
      %1464 = vmatprep.subr.bf16.mxu0 0
      %1465 = vmatpush1.bf16.msra.mxu0 0
      %1466 = vmatprep.subr.bf16.mxu0 0
      %1467 = vmatpush1.bf16.msra.mxu0 0
      %1468 = vmatprep.subr.bf16.mxu0 0
      %1469 = vmatpush1.bf16.msra.mxu0 0
      %1470 = vmatprep.subr.bf16.mxu0 0
      %1471 = vmatpush1.bf16.msra.mxu0 0
      %1472 = vmatprep.subr.bf16.mxu0 0
      %1473 = vmatpush1.bf16.msra.mxu0 0
      %1474 = vmatprep.subr.bf16.mxu0 0
      %1475 = vmatpush1.bf16.msra.mxu0 0
      %1476 = vmatprep.subr.bf16.mxu0 0
      %1477 = vmatpush1.bf16.msra.mxu0 0
      %1478 = vmatprep.subr.bf16.mxu0 0
      %1479 = vmatpush1.bf16.msra.mxu0 0
      %1480 = vmatprep.subr.bf16.mxu0 0
      %1481 = vmatpush1.bf16.msra.mxu0 0
      %1482 = vmatprep.subr.bf16.mxu0 0
      %1483 = vmatpush1.bf16.msra.mxu0 0
      %1484 = vmatprep.mubr.bf16.mxu0 0
      %1485 = vmatmul.mubr.bf16.gmra.mrb[0].mxu0 %v1438
      %v1486 = vpop.f32.mrb[0].mxu0
      %v1487 = vadd.f32 0.0, %v1486
      %v1488 = vpop.f32.mrb[0].mxu0
      %v1489 = vpop.f32.mrb[0].mxu0
      %v1490 = vadd.f32 0.0, %v1489
      %v1491 = vpop.f32.mrb[0].mxu0
      %1492 = vmatprep.mubr.bf16.mxu0 0
      %1493 = vmatmul.mubr.bf16.gmra.mrb[0].mxu0 %v1441
      %v1494 = vpop.f32.mrb[0].mxu0
      %v1495 = vadd.f32 0.0, %v1494
      %v1496 = vpop.f32.mrb[0].mxu0
      %v1497 = vpop.f32.mrb[0].mxu0
      %v1498 = vadd.f32 0.0, %v1497
      %v1499 = vpop.f32.mrb[0].mxu0
      %1500 = vmatprep.mubr.bf16.mxu0 0
      %1501 = vmatmul.mubr.bf16.gmra.mrb[0].mxu0 %v1444
      %v1502 = vpop.f32.mrb[0].mxu0
      %v1503 = vadd.f32 0.0, %v1502
      %v1504 = vpop.f32.mrb[0].mxu0
      %v1505 = vpop.f32.mrb[0].mxu0
      %v1506 = vadd.f32 0.0, %v1505
      %v1507 = vpop.f32.mrb[0].mxu0
      %1508 = vmatprep.mubr.bf16.mxu0 0
      %1509 = vmatmul.mubr.bf16.gmra.mrb[0].mxu0 %v1447
      %v1510 = vpop.f32.mrb[0].mxu0
      %v1511 = vadd.f32 0.0, %v1510
      %v1512 = vpop.f32.mrb[0].mxu0
      %v1513 = vpop.f32.mrb[0].mxu0
      %v1514 = vadd.f32 0.0, %v1513
      %v1515 = vpop.f32.mrb[0].mxu0
      %1516 = vmatprep.mubr.bf16.mxu0 0
      %1517 = vmatmul.mubr.bf16.gmra.mrb[0].mxu0 %v1450
      %v1518 = vpop.f32.mrb[0].mxu0
      %v1519 = vadd.f32 0.0, %v1518
      %v1520 = vpop.f32.mrb[0].mxu0
      %v1521 = vpop.f32.mrb[0].mxu0
      %v1522 = vpop.f32.mrb[0].mxu0
      %1523 = vdwg.mxu0
      %v1524 = vadd.f32 %v1374, %v1487
      %v1525 = vadd.f32 %v1375, %v1490
      %v1526 = vadd.f32 %v1376, %v1495
      %v1527 = vadd.f32 %v1377, %v1498
      %v1528 = vadd.f32 %v1378, %v1503
      %v1529 = vadd.f32 %v1379, %v1506
      %v1530 = vadd.f32 %v1380, %v1511
      %v1531 = vadd.f32 %v1381, %v1514
      %v1532 = vadd.f32 %v1382, %v1519
      %v1533 = vld [vmem:[%s2] sm:$0x1]
      %v1535 = vlaneseq
      %v1536 = vshrl.u32 %v1535, 7
      %v1537 = vsub.s32 0, %v1536
      %v1538 = vrot.slane %v1533, %v1537
      %v1540 = vadd.f32 %v1524, %v1538
      %v1541 = vadd.f32 %v1525, %v1538
      %v1542 = vadd.f32 %v1526, %v1538
      %v1543 = vadd.f32 %v1527, %v1538
      %v1544 = vadd.f32 %v1528, %v1538
      %v1545 = vadd.f32 %v1529, %v1538
      %v1546 = vadd.f32 %v1530, %v1538
      %v1547 = vadd.f32 %v1531, %v1538
      %v1548 = vadd.f32 %v1532, %v1538
      %v1549 = vld [vmem:[%s212] sm:$0xf]
      %v1550 = vld [vmem:[%s212 + $0x4] sm:$0xf]
      %v1551 = vld [vmem:[%s212 + $0x8] sm:$0xf]
      %v1552 = vld [vmem:[%s212 + $0xc] sm:$0xf]
      %v1553 = vld [vmem:[%s212 + $0x10] sm:$0xf]
      %v1554 = vld [vmem:[%s212 + $0x14] sm:$0xf]
      %v1555 = vld [vmem:[%s212 + $0x18] sm:$0xf]
      %v1556 = vld [vmem:[%s212 + $0x1c] sm:$0xf]
      %v1557 = vld [vmem:[%s212 + $0x20] sm:$0xf]
      %v1558 = vunpack.c.l.bf16 %v1549
      %v1559 = vunpack.c.l.bf16 %v1550
      %v1560 = vunpack.c.l.bf16 %v1551
      %v1561 = vunpack.c.l.bf16 %v1552
      %v1562 = vunpack.c.l.bf16 %v1553
      %v1563 = vunpack.c.l.bf16 %v1554
      %v1564 = vunpack.c.l.bf16 %v1555
      %v1565 = vunpack.c.l.bf16 %v1556
      %v1566 = vunpack.c.l.bf16 %v1557
      %v1567 = vadd.f32 %v1540, %v1558
      %v1568 = vadd.f32 %v1541, %v1559
      %v1569 = vadd.f32 %v1542, %v1560
      %v1570 = vadd.f32 %v1543, %v1561
      %v1571 = vadd.f32 %v1544, %v1562
      %v1572 = vadd.f32 %v1545, %v1563
      %v1573 = vadd.f32 %v1546, %v1564
      %v1574 = vadd.f32 %v1547, %v1565
      %v1575 = vadd.f32 %v1548, %v1566
      %v1576 = vmax.f32 %v1567, 0.0
      %v1577 = vmax.f32 %v1568, 0.0
      %v1578 = vmax.f32 %v1569, 0.0
      %v1579 = vmax.f32 %v1570, 0.0
      %v1580 = vmax.f32 %v1571, 0.0
      %v1581 = vmax.f32 %v1572, 0.0
      %v1582 = vmax.f32 %v1573, 0.0
      %v1583 = vmax.f32 %v1574, 0.0
      %v1584 = vmax.f32 %v1575, 0.0
      %v1585 = vpack.c.bf16 %v1577, %v1576
      %v1586 = vpack.c.bf16 %v1579, %v1578
      %v1587 = vpack.c.bf16 %v1581, %v1580
      %v1588 = vpack.c.bf16 %v1583, %v1582
      %v1589 = vpack.c.bf16 %v1584, %v1584
      %v1595 = vunpack.c.l.b16 %v1585
      %v1596 = vunpack.c.h.b16 %v1585
      %v1597 = vunpack.c.l.b16 %v1586
      %v1598 = vunpack.c.h.b16 %v1586
      %v1599 = vunpack.c.l.b16 %v1587
      %v1600 = vunpack.c.h.b16 %v1587
      %v1601 = vunpack.c.l.b16 %v1588
      %v1602 = vunpack.c.h.b16 %v1588
      %v1603 = vunpack.c.l.b16 %v1589
      %v1604 = vpack.c.b16 %v1595, %v1595
      %v1605 = vpack.c.b16 %v1596, %v1596
      %v1606 = vpack.c.b16 %v1597, %v1597
      %v1607 = vpack.c.b16 %v1598, %v1598
      %v1608 = vpack.c.b16 %v1599, %v1599
      %v1609 = vpack.c.b16 %v1600, %v1600
      %v1610 = vpack.c.b16 %v1601, %v1601
      %v1611 = vpack.c.b16 %v1602, %v1602
      %v1612 = vpack.c.b16 %v1603, %v1603
      %vm1622 = vcmask 257024
      %1623 = vst.msk [vmem:[%s217] sm:$0xf] %vm1622, %v1604
      %1624 = vst.msk [vmem:[%s217 + $0x4] sm:$0xf] %vm1622, %v1605
      %1625 = vst.msk [vmem:[%s217 + $0x8] sm:$0xf] %vm1622, %v1606
      %1626 = vst.msk [vmem:[%s217 + $0xc] sm:$0xf] %vm1622, %v1607
      %1627 = vst.msk [vmem:[%s217 + $0x10] sm:$0xf] %vm1622, %v1608
      %1628 = vst.msk [vmem:[%s217 + $0x14] sm:$0xf] %vm1622, %v1609
      %1629 = vst.msk [vmem:[%s217 + $0x18] sm:$0xf] %vm1622, %v1610
      %1630 = vst.msk [vmem:[%s217 + $0x1c] sm:$0xf] %vm1622, %v1611
      %vm1631 = vcmask 257024
      %vm1632 = vsmask.f32 3328
      %vm1633 = vmand %vm1631, %vm1632
      %v1634 = vld [vmem:[%s217 + $0x20] sm:$0xf]
      %v1635 = vsel %vm1633, %v1612, %v1634
      %1636 = vst [vmem:[%s217 + $0x20] sm:$0xf] %v1635
      %vm1637 = vcmask 257027
      %vm1638 = vsmask.f32 7950
      %vm1639 = vmand %vm1637, %vm1638
      %v1640 = vld [vmem:[%s217 + $0x20] sm:$0x8]
      %v1641 = vsel %vm1639, 0, %v1640
      %1642 = vst [vmem:[%s217 + $0x20] sm:$0x8] %v1641
      %p1643 = scmp.lt.s32.totalorder %s15, 1
      %s1644 = scalar_select %p1643, %s15, 1
      %s1645 = smul.addr %s1644, 9
      %s1646 = smul.addr %s1645, 4
      %s1647 = scalar_lea.vmem %s4, %s1646
      // Predicated region
      $region37: #{tpu_custom_call.1} parent=35 // pred_check
        %p1648 = pneg %p127
      $region38: #{tpu_custom_call.1} parent=35 // pred_check_branch
        %1650 = sbr.rel (%p1648) target = $region40
      $region39: #{tpu_custom_call.1} parent=35 // pred_region
        _
      $region40: #{tpu_custom_call.1} parent=35 // pred_fallthru
        _
    $region36: #{tpu_custom_call.1} parent=5 // pred_fallthru
      _
    %p1651 = scmp.le.s32.totalorder 2, %s10
    // Predicated region
    $region41: #{tpu_custom_call.1} parent=5 // pred_check
      %p1652 = pneg %p1651
    $region42: #{tpu_custom_call.1} parent=5 // pred_check_branch
      %1654 = sbr.rel (%p1652) target = $region44
    $region43: #{tpu_custom_call.1} parent=5 // pred_region
      %s1655 = ssub.s32 %s10, 2
      // Predicated region
      $region45: #{tpu_custom_call.1} parent=43 // pred_check
        %p1656 = pneg %p133
      $region46: #{tpu_custom_call.1} parent=43 // pred_check_branch
        %1658 = sbr.rel (%p1656) target = $region48
      $region47: #{tpu_custom_call.1} parent=43 // pred_region
        %p1659 = scmp.lt.s32.totalorder %s16, 1
        %s1660 = scalar_select %p1659, %s16, 1
        %s1661 = smul.addr %s1660, 9
        %s1662 = smul.addr %s1661, 4
        %s1663 = scalar_lea.vmem %s4, %s1662
      $region48: #{tpu_custom_call.1} parent=43 // pred_fallthru
        _
    $region44: #{tpu_custom_call.1} parent=5 // pred_fallthru
      _
  $region6: #{tpu_custom_call.1} parent=0 // loop_footer
    %s14 = sadd.s32 1, %s10
  $region7: #{tpu_custom_call.1} parent=0 // loop_footer_branch
    %9 = sbr.rel target = $region3
  $region8: #{tpu_custom_call.1} parent=0 // loop_exit
    _

</llo_original>
